<compile_context>
chip_gen: v7x
topology: tpu7x:2x2x1
jax: 0.10.0
libtpu: 0.0.40
codegen_flags: <defaults>
</compile_context>

<pallas_src>
import functools

import numpy as np
import jax
import jax.numpy as jnp
from jax.experimental import pallas as pl
from jax.experimental.pallas import tpu as pltpu

LANE = 128        # TPU lane width; every feature axis is padded to this
H1 = 64           # encoder hidden width   (Linear(pole_obs_dim, 64))
H3 = 128          # policy  hidden width   (Linear(latent+cart, 128))
MAX_TILE_B = 2048 # batch-tile cap (double-buffered tile stream ~1.2 MiB)


def _round_up(x, m):
    return (x + m - 1) // m * m


def _cdiv(a, b):
    return (a + b - 1) // b


def _tpu_cores_per_chip():
    """Best-effort TensorCore-per-device count (affects tiling only)."""
    try:
        kind = jax.devices()[0].device_kind.lower()
    except Exception:
        return 1
    single_tc = ("v5e", "v5 lite", "v5lite", "v6e", "v6 lite", "v6lite",
                 "v2", "v3")
    if any(s in kind for s in single_tc):
        return 1
    dual_tc = ("7", "v4", "v5p")
    if any(s in kind for s in dual_tc):
        return 2
    return 1


# ----------------------------------------------------------------------------
# Kernel: one batch tile (TB rows) through the whole network.
# ----------------------------------------------------------------------------
def _policy_kernel(obs_ref, cart_ref, w_ref, b_ref, out_ref, *, k1, cart_dim):
    # obs: (TB, k1) bf16 = [pole | zeros | 1.0 constant lane]
    obs = obs_ref[...]
    # fp32 slab (one vreg): row 0 = b4, rows 1..cart_dim = w3b (cart weights)
    sb = b_ref[...]

    # encoder layer 1: Linear(pole,64)+ReLU.  b1 is folded into weight row
    # k1-1 via the constant-1 lane; (row k1-1, lane 127) = 1 keeps h1[:,127]=1.
    h1 = jnp.maximum(
        jnp.dot(obs, w_ref[0:k1, :], preferred_element_type=jnp.float32), 0.0)

    # encoder layer 2: Linear(64,latent)+ReLU (b2 folded via h1 lane 127).
    o = k1
    lat = jnp.maximum(
        jnp.dot(h1.astype(jnp.bfloat16), w_ref[o:o + LANE, :],
                preferred_element_type=jnp.float32), 0.0)

    # policy layer 1: latent @ w3a (b3 folded via lat lane 127) + cart @ w3b.
    o += LANE
    h3 = jnp.dot(lat.astype(jnp.bfloat16), w_ref[o:o + LANE, :],
                 preferred_element_type=jnp.float32)
    cart = cart_ref[...]                                     # (TB, cart_dim) fp32
    terms = [cart[:, c:c + 1] * sb[1 + c:2 + c, :] for c in range(cart_dim)]
    cart_contrib = terms[0]
    for t in terms[1:]:
        cart_contrib = cart_contrib + t
    h3 = jnp.maximum(h3 + cart_contrib, 0.0)

    # policy layer 2: Linear(128, n_actions); b4 added in fp32 (no spare lane).
    o += LANE
    logits = jnp.dot(h3.astype(jnp.bfloat16), w_ref[o:o + LANE, :],
                     preferred_element_type=jnp.float32) + sb[0:1, :]
    out_ref[...] = logits.astype(out_ref.dtype)              # bf16 lane-dense slab


# ----------------------------------------------------------------------------
# Parameter init (mimics nn.Linear default) and slab packing.
# ----------------------------------------------------------------------------
def init_params(key, cart_dim, pole_obs_dim, latent_dim, n_actions):
    """Weights stored (in, out); biases (1, out)."""
    def linear(k, fan_in, fan_out):
        kw, kb = jax.random.split(k)
        bound = 1.0 / np.sqrt(fan_in)
        w = jax.random.uniform(kw, (fan_in, fan_out), jnp.float32, -bound, bound)
        b = jax.random.uniform(kb, (1, fan_out), jnp.float32, -bound, bound)
        return w, b

    k1, k2, k3, k4 = jax.random.split(key, 4)
    w1, b1 = linear(k1, pole_obs_dim, H1)
    w2, b2 = linear(k2, H1, latent_dim)
    w3, b3 = linear(k3, latent_dim + cart_dim, H3)
    w4, b4 = linear(k4, H3, n_actions)
    return {"w1": w1, "b1": b1, "w2": w2, "b2": b2,
            "w3a": w3[:latent_dim, :], "w3b": w3[latent_dim:, :], "b3": b3,
            "w4": w4, "b4": b4}


def pack_params(params, cart_dim, pole_obs_dim, latent_dim, n_actions):
    """Pack into (bf16 MXU weight slab with folded b1/b2/b3, fp32 b4/w3b slab)."""
    assert H1 < LANE and latent_dim < LANE and n_actions <= LANE and H3 == LANE
    assert cart_dim <= 7, "fp32 slab reserves rows 1..7 for the cart weights"

    # bf16 sublane tile is 16 rows -> keep blocks 16-row aligned so the static
    # in-kernel slices stay tile-aligned.  Row k1-1 is the constant-1 row.
    k1 = _round_up(pole_obs_dim + 1, 16)

    def block(rows):
        return np.zeros((rows, LANE), np.float32)

    # Block A: w1 on the pole rows; b1 in the constant row; 1.0 at lane 127
    # keeps a live constant through the ReLU for the next layer's bias.
    a = block(k1)
    a[:pole_obs_dim, :H1] = np.asarray(params["w1"])
    a[k1 - 1, :H1] = np.asarray(params["b1"])[0]
    a[k1 - 1, LANE - 1] = 1.0

    # Block B: w2; b2 folded into row 127; constant-1 lane kept alive.
    bblk = block(LANE)
    bblk[:H1, :latent_dim] = np.asarray(params["w2"])
    bblk[LANE - 1, :latent_dim] = np.asarray(params["b2"])[0]
    bblk[LANE - 1, LANE - 1] = 1.0

    # Block C: w3a; b3 folded into row 127 (all 128 output lanes live).
    cblk = block(LANE)
    cblk[:latent_dim, :H3] = np.asarray(params["w3a"])
    cblk[LANE - 1, :H3] = np.asarray(params["b3"])[0]

    # Block D: w4 (b4 stays fp32 -- h3 has no spare lane).
    dblk = block(LANE)
    dblk[:H3, :n_actions] = np.asarray(params["w4"])

    wslab = jnp.asarray(np.concatenate([a, bblk, cblk, dblk], axis=0),
                        jnp.bfloat16)                          # (k1+384, 128) bf16

    bs = np.zeros((8, LANE), np.float32)                       # one vreg
    bs[0, :n_actions] = np.asarray(params["b4"])[0]
    bs[1:1 + cart_dim, :H3] = np.asarray(params["w3b"])
    bslab = jnp.asarray(bs)

    meta = {"pole_obs_dim": pole_obs_dim, "cart_dim": cart_dim,
            "latent_dim": latent_dim, "n_actions": n_actions, "k1": k1}
    return wslab, bslab, meta


# ----------------------------------------------------------------------------
# Forward wrapper: generation-aware batch tiling, resident weights, bf16 output.
# ----------------------------------------------------------------------------
def policy_agent_forward(cart_state, pole_state, packed, *, tile_b=None):
    wslab, bslab, meta = packed
    pole_dim = meta["pole_obs_dim"]
    cart_dim = meta["cart_dim"]
    n_actions = meta["n_actions"]
    k1 = meta["k1"]

    B = cart_state.shape[0]
    if tile_b is None:
        # One big tile per TensorCore (rounded so the 256-wide MXU M stays
        # full), capped so the double-buffered tile stream stays tiny in VMEM.
        n_tc = _tpu_cores_per_chip()
        tb = min(MAX_TILE_B, _round_up(_cdiv(max(B, 1), n_tc), 256))
    else:
        tb = min(_round_up(tile_b, 16), _round_up(max(B, 16), 16))
    tb = max(16, tb)
    b_pad = _round_up(max(B, 1), tb)

    # Activation slabs: bf16 [pole | 0 | 1.0] for the MXU; cart kept fp32.
    obs = jnp.zeros((b_pad, k1), jnp.bfloat16)
    obs = obs.at[:B, :pole_dim].set(pole_state.astype(jnp.bfloat16))
    obs = obs.at[:, k1 - 1].set(1.0)
    cart = jnp.zeros((b_pad, cart_dim), jnp.float32)
    cart = cart.at[:B, :].set(cart_state.astype(jnp.float32))

    # Cost estimate with padded (actual MXU) dims and bf16 output bytes.
    flops = 2 * b_pad * (k1 * LANE + 3 * LANE * LANE)
    per_row_bytes = 2 * k1 + 4 * cart_dim + 2 * LANE
    resident_bytes = wslab.size * 2 + bslab.size * 4
    bytes_accessed = int(b_pad * per_row_bytes + resident_bytes)

    # Explicit VMEM budget (v7x physical VMEM is only 64 MiB).
    vmem_need = 2 * (per_row_bytes * tb + resident_bytes)     # double-buffered
    vmem_limit = int(min(48 << 20, max(32 << 20, 2 * vmem_need)))

    kernel = functools.partial(_policy_kernel, k1=k1, cart_dim=cart_dim)

    out = pl.pallas_call(
        kernel,
        out_shape=jax.ShapeDtypeStruct((b_pad, LANE), jnp.bfloat16),
        grid=(b_pad // tb,),
        in_specs=[
            pl.BlockSpec((tb, k1), lambda i: (i, 0)),          # pole+const (tiled)
            pl.BlockSpec((tb, cart_dim), lambda i: (i, 0)),    # cart fp32 (tiled)
            pl.BlockSpec(wslab.shape, lambda i: (0, 0)),       # weights: resident
            pl.BlockSpec(bslab.shape, lambda i: (0, 0)),       # b4 + w3b: resident
        ],
        out_specs=pl.BlockSpec((tb, LANE), lambda i: (i, 0)),  # lane-dense bf16
        compiler_params=pltpu.CompilerParams(
            dimension_semantics=("parallel",),
            vmem_limit_bytes=vmem_limit),
        cost_estimate=pl.CostEstimate(flops=flops, transcendentals=0,
                                      bytes_accessed=bytes_accessed),
    )(obs, cart, wslab, bslab)

    return out[:B, :n_actions].astype(jnp.float32)


# ----------------------------------------------------------------------------
# Pure-JAX reference (bf16-weight matmuls, fp32 accumulation / biases / cart).
# ----------------------------------------------------------------------------
def reference_forward(cart_state, pole_state, params):
    def mm(x, w):
        return jnp.dot(x.astype(jnp.bfloat16), w.astype(jnp.bfloat16),
                       preferred_element_type=jnp.float32)

    h1 = jnp.maximum(mm(pole_state, params["w1"]) + params["b1"], 0.0)
    lat = jnp.maximum(mm(h1, params["w2"]) + params["b2"], 0.0)
    h3 = jnp.maximum(mm(lat, params["w3a"]) + cart_state @ params["w3b"]
                     + params["b3"], 0.0)
    return mm(h3, params["w4"]) + params["b4"]


if __name__ == "__main__":
    # TODO(synk): only forward() is implemented; get_action's Categorical
    # sampling, reward bookkeeping, and the Adam/REINFORCE update have no
    # Pallas equivalent here.
    cart_dim, pole_obs_dim, latent_dim, n_actions = 2, 12, 16, 2
    batch = 512   # small rollout batch; 1 tile on v5e/v6e, 2 tiles on v7x

    key = jax.random.PRNGKey(0)
    kp, kc, ks = jax.random.split(key, 3)

    params = init_params(kp, cart_dim, pole_obs_dim, latent_dim, n_actions)
    packed = pack_params(params, cart_dim, pole_obs_dim, latent_dim, n_actions)

    cart_state = jax.random.normal(kc, (batch, cart_dim), jnp.float32)
    pole_state = jax.random.normal(ks, (batch, pole_obs_dim), jnp.float32)

    logits = policy_agent_forward(cart_state, pole_state, packed)
    jax.block_until_ready(logits)

    ref = reference_forward(cart_state, pole_state, params)
    # bf16 output slab + bf16-folded biases -> compare at bf16-level tolerance.
    np.testing.assert_allclose(np.asarray(logits), np.asarray(ref),
                               rtol=2e-2, atol=2e-2)

    print("KERNEL_OK")
</pallas_src>

<mosaic_0001>
module attributes {stable_mosaic.version = 11 : i64} {
  func.func @_policy_kernel(%arg0: i32, %arg1: memref<512x16xbf16, #tpu.memory_space<vmem>>, %arg2: memref<512x2xf32, #tpu.memory_space<vmem>>, %arg3: memref<400x128xbf16, #tpu.memory_space<vmem>>, %arg4: memref<8x128xf32, #tpu.memory_space<vmem>>, %arg5: memref<512x128xbf16, #tpu.memory_space<vmem>>) attributes {dimension_semantics = [#tpu.dimension_semantics<parallel>], iteration_bounds = array<i64: 1>, scalar_prefetch = 0 : i64, scratch_operands = 0 : i64, tpu.core_type = #tpu.core_type<tc>, window_params = [{transform_indices = @transform_0, window_bounds = array<i64: 512, 16>}, {transform_indices = @transform_1, window_bounds = array<i64: 512, 2>}, {pipeline_mode = #tpu.pipeline_mode<synchronous>, transform_indices = @transform_2, window_bounds = array<i64: 400, 128>}, {pipeline_mode = #tpu.pipeline_mode<synchronous>, transform_indices = @transform_3, window_bounds = array<i64: 8, 128>}, {transform_indices = @transform_4, window_bounds = array<i64: 512, 128>}]} {
    %c0 = arith.constant 0 : index
    %c0_0 = arith.constant 0 : index
    %0 = vector.load %arg1[%c0, %c0_0] : memref<512x16xbf16, #tpu.memory_space<vmem>>, vector<512x16xbf16>
    %c0_1 = arith.constant 0 : index
    %c0_2 = arith.constant 0 : index
    %1 = vector.load %arg4[%c0_1, %c0_2] : memref<8x128xf32, #tpu.memory_space<vmem>>, vector<8x128xf32>
    %c0_3 = arith.constant 0 : index
    %c0_4 = arith.constant 0 : index
    %2 = vector.load %arg3[%c0_3, %c0_4] : memref<400x128xbf16, #tpu.memory_space<vmem>>, vector<16x128xbf16>
    %cst = arith.constant dense<0.000000e+00> : vector<512x128xf32>
    %3 = tpu.matmul %0, %2, %cst {dimension_numbers = #tpu.dot_dimension_numbers<[1], [0], [0], [1], [0, 0, 1, 1], [], []>} : vector<512x16xbf16>, vector<16x128xbf16>, vector<512x128xf32> -> vector<512x128xf32>
    %cst_5 = arith.constant 0.000000e+00 : f32
    %4 = vector.broadcast %cst_5 : f32 to vector<512x128xf32>
    %5 = arith.maximumf %3, %4 : vector<512x128xf32>
    %6 = arith.truncf %5 : vector<512x128xf32> to vector<512x128xbf16>
    %c16 = arith.constant 16 : index
    %c0_6 = arith.constant 0 : index
    %7 = vector.load %arg3[%c16, %c0_6] : memref<400x128xbf16, #tpu.memory_space<vmem>>, vector<128x128xbf16>
    %cst_7 = arith.constant dense<0.000000e+00> : vector<512x128xf32>
    %8 = tpu.matmul %6, %7, %cst_7 {dimension_numbers = #tpu.dot_dimension_numbers<[1], [0], [0], [1], [0, 0, 1, 1], [], []>} : vector<512x128xbf16>, vector<128x128xbf16>, vector<512x128xf32> -> vector<512x128xf32>
    %cst_8 = arith.constant 0.000000e+00 : f32
    %9 = vector.broadcast %cst_8 : f32 to vector<512x128xf32>
    %10 = arith.maximumf %8, %9 : vector<512x128xf32>
    %11 = arith.truncf %10 : vector<512x128xf32> to vector<512x128xbf16>
    %c144 = arith.constant 144 : index
    %c0_9 = arith.constant 0 : index
    %12 = vector.load %arg3[%c144, %c0_9] : memref<400x128xbf16, #tpu.memory_space<vmem>>, vector<128x128xbf16>
    %cst_10 = arith.constant dense<0.000000e+00> : vector<512x128xf32>
    %13 = tpu.matmul %11, %12, %cst_10 {dimension_numbers = #tpu.dot_dimension_numbers<[1], [0], [0], [1], [0, 0, 1, 1], [], []>} : vector<512x128xbf16>, vector<128x128xbf16>, vector<512x128xf32> -> vector<512x128xf32>
    %c0_11 = arith.constant 0 : index
    %c0_12 = arith.constant 0 : index
    %14 = vector.load %arg2[%c0_11, %c0_12] : memref<512x2xf32, #tpu.memory_space<vmem>>, vector<512x2xf32>
    %15 = vector.extract_strided_slice %14 {offsets = [0, 0], sizes = [512, 1], strides = [1, 1]} : vector<512x2xf32> to vector<512x1xf32>
    %16 = vector.extract_strided_slice %1 {offsets = [1, 0], sizes = [1, 128], strides = [1, 1]} : vector<8x128xf32> to vector<1x128xf32>
    %17 = vector.broadcast %15 : vector<512x1xf32> to vector<512x128xf32>
    %18 = vector.broadcast %16 : vector<1x128xf32> to vector<512x128xf32>
    %19 = arith.mulf %17, %18 : vector<512x128xf32>
    %20 = vector.extract_strided_slice %14 {offsets = [0, 1], sizes = [512, 1], strides = [1, 1]} : vector<512x2xf32> to vector<512x1xf32>
    %21 = vector.extract_strided_slice %1 {offsets = [2, 0], sizes = [1, 128], strides = [1, 1]} : vector<8x128xf32> to vector<1x128xf32>
    %22 = vector.broadcast %20 : vector<512x1xf32> to vector<512x128xf32>
    %23 = vector.broadcast %21 : vector<1x128xf32> to vector<512x128xf32>
    %24 = arith.mulf %22, %23 : vector<512x128xf32>
    %25 = arith.addf %19, %24 : vector<512x128xf32>
    %26 = arith.addf %13, %25 : vector<512x128xf32>
    %cst_13 = arith.constant 0.000000e+00 : f32
    %27 = vector.broadcast %cst_13 : f32 to vector<512x128xf32>
    %28 = arith.maximumf %26, %27 : vector<512x128xf32>
    %29 = arith.truncf %28 : vector<512x128xf32> to vector<512x128xbf16>
    %c272 = arith.constant 272 : index
    %c0_14 = arith.constant 0 : index
    %30 = vector.load %arg3[%c272, %c0_14] : memref<400x128xbf16, #tpu.memory_space<vmem>>, vector<128x128xbf16>
    %cst_15 = arith.constant dense<0.000000e+00> : vector<512x128xf32>
    %31 = tpu.matmul %29, %30, %cst_15 {dimension_numbers = #tpu.dot_dimension_numbers<[1], [0], [0], [1], [0, 0, 1, 1], [], []>} : vector<512x128xbf16>, vector<128x128xbf16>, vector<512x128xf32> -> vector<512x128xf32>
    %32 = vector.extract_strided_slice %1 {offsets = [0, 0], sizes = [1, 128], strides = [1, 1]} : vector<8x128xf32> to vector<1x128xf32>
    %33 = vector.broadcast %32 : vector<1x128xf32> to vector<512x128xf32>
    %34 = arith.addf %31, %33 : vector<512x128xf32>
    %35 = arith.truncf %34 : vector<512x128xf32> to vector<512x128xbf16>
    %c0_16 = arith.constant 0 : index
    %c0_17 = arith.constant 0 : index
    %36 = vector.load %arg5[%c0_16, %c0_17] : memref<512x128xbf16, #tpu.memory_space<vmem>>, vector<512x128xbf16>
    tpu.vector_store %arg5[%c0_16, %c0_17], %35 {strides = array<i32>} : memref<512x128xbf16, #tpu.memory_space<vmem>>, vector<512x128xbf16>,
    return
  }
  func.func @transform_0(%arg0: i32) -> (i32, i32) {
    %c0_i32 = arith.constant 0 : i32
    %c0_i32_0 = arith.constant 0 : i32
    return %arg0, %c0_i32 : i32, i32
  }
  func.func @transform_1(%arg0: i32) -> (i32, i32) {
    %c0_i32 = arith.constant 0 : i32
    %c0_i32_0 = arith.constant 0 : i32
    return %arg0, %c0_i32 : i32, i32
  }
  func.func @transform_2(%arg0: i32) -> (i32, i32) {
    %c0_i32 = arith.constant 0 : i32
    %c0_i32_0 = arith.constant 0 : i32
    %c0_i32_1 = arith.constant 0 : i32
    return %c0_i32, %c0_i32_0 : i32, i32
  }
  func.func @transform_3(%arg0: i32) -> (i32, i32) {
    %c0_i32 = arith.constant 0 : i32
    %c0_i32_0 = arith.constant 0 : i32
    %c0_i32_1 = arith.constant 0 : i32
    return %c0_i32, %c0_i32_0 : i32, i32
  }
  func.func @transform_4(%arg0: i32) -> (i32, i32) {
    %c0_i32 = arith.constant 0 : i32
    %c0_i32_0 = arith.constant 0 : i32
    return %arg0, %c0_i32 : i32, i32
  }
}

</mosaic_0001>

<llo_original>
// kernel: tpu_custom_call.1
$region0: #{tpu_custom_call.1}
  #allocation0 [shape = 'u32[]', space=smem, size = 0x4, offset = 0x4, fixed_abs, tag = 'smem constant byte address 0x4 - core index']
  #allocation1 [shape = 'u32[144,128]{1,0:T(1,128)}', space=vmem, size = 0x12000, scoped, tag = 'internal scratch']
  %s0 = inlined_call_operand.vmem [shape: bf16[512,16], index: 0, kind: input, shape index: {}]
  %s1 = inlined_call_operand.vmem [shape: f32[512,2], index: 1, kind: input, shape index: {}]
  %s2 = inlined_call_operand.vmem [shape: bf16[400,128], index: 2, kind: input, shape index: {}]
  %s3 = inlined_call_operand.vmem [shape: f32[8,128], index: 3, kind: input, shape index: {}]
  %s4 = inlined_call_operand.hbm [shape: bf16[512,128], index: 4, kind: output, shape index: {}]
  %s5 = sld [smem:[#allocation0]]
  $region26: #{tpu_custom_call.1} parent=0
    _
  %s7 = ssub.s32 1, %s5
  %s8 = scalar_select 0, %s7, %s5
  $region1: #{tpu_custom_call.1} parent=0
    #allocation2 [shape = 'u8[131072]{0}', space=vmem, size = 0x20000, scoped, tag = 'output window, operand 0, single buffered']
    #allocation3 [shape = 's32[1]{0}', space=sflag, size = 0x4, scoped, tag = 'scoped memory for tpu_custom_call.1']
    %9 = vsyncpa [#allocation3], 0
    // Predicated region
    $region2: #{tpu_custom_call.1} parent=1 // pred_check
      _
    $region3: #{tpu_custom_call.1} parent=1 // pred_check_branch
      %11 = sbr.rel (0) target = $region5
    $region4: #{tpu_custom_call.1} parent=1 // pred_region
      _
    $region5: #{tpu_custom_call.1} parent=1 // pred_fallthru
      _
    // Predicated region
    $region6: #{tpu_custom_call.1} parent=1 // pred_check
      _
    $region7: #{tpu_custom_call.1} parent=1 // pred_check_branch
      %13 = sbr.rel (0) target = $region9
    $region8: #{tpu_custom_call.1} parent=1 // pred_region
      _
    $region9: #{tpu_custom_call.1} parent=1 // pred_fallthru
      _
    // Predicated region
    $region10: #{tpu_custom_call.1} parent=1 // pred_check
      _
    $region11: #{tpu_custom_call.1} parent=1 // pred_check_branch
      %15 = sbr.rel (0) target = $region13
    $region12: #{tpu_custom_call.1} parent=1 // pred_region
      _
    $region13: #{tpu_custom_call.1} parent=1 // pred_fallthru
      _
    // Predicated region
    $region14: #{tpu_custom_call.1} parent=1 // pred_check
      _
    $region15: #{tpu_custom_call.1} parent=1 // pred_check_branch
      %17 = sbr.rel (0) target = $region17
    $region16: #{tpu_custom_call.1} parent=1 // pred_region
      _
    $region17: #{tpu_custom_call.1} parent=1 // pred_fallthru
      _
    %v19 = vld [vmem:[%s0] sm:$0xf]
    %v20 = vld [vmem:[%s0 + $0x4] sm:$0xf]
    %v21 = vld [vmem:[%s0 + $0x8] sm:$0xf]
    %v22 = vld [vmem:[%s0 + $0xc] sm:$0xf]
    %v23 = vld [vmem:[%s0 + $0x10] sm:$0xf]
    %v24 = vld [vmem:[%s0 + $0x14] sm:$0xf]
    %v25 = vld [vmem:[%s0 + $0x18] sm:$0xf]
    %v26 = vld [vmem:[%s0 + $0x1c] sm:$0xf]
    %v27 = vld [vmem:[%s0 + $0x20] sm:$0xf]
    %v28 = vld [vmem:[%s0 + $0x24] sm:$0xf]
    %v29 = vld [vmem:[%s0 + $0x28] sm:$0xf]
    %v30 = vld [vmem:[%s0 + $0x2c] sm:$0xf]
    %v31 = vld [vmem:[%s0 + $0x30] sm:$0xf]
    %v32 = vld [vmem:[%s0 + $0x34] sm:$0xf]
    %v33 = vld [vmem:[%s0 + $0x38] sm:$0xf]
    %v34 = vld [vmem:[%s0 + $0x3c] sm:$0xf]
    %v35 = vld [vmem:[%s0 + $0x40] sm:$0xf]
    %v36 = vld [vmem:[%s0 + $0x44] sm:$0xf]
    %v37 = vld [vmem:[%s0 + $0x48] sm:$0xf]
    %v38 = vld [vmem:[%s0 + $0x4c] sm:$0xf]
    %v39 = vld [vmem:[%s0 + $0x50] sm:$0xf]
    %v40 = vld [vmem:[%s0 + $0x54] sm:$0xf]
    %v41 = vld [vmem:[%s0 + $0x58] sm:$0xf]
    %v42 = vld [vmem:[%s0 + $0x5c] sm:$0xf]
    %v43 = vld [vmem:[%s0 + $0x60] sm:$0xf]
    %v44 = vld [vmem:[%s0 + $0x64] sm:$0xf]
    %v45 = vld [vmem:[%s0 + $0x68] sm:$0xf]
    %v46 = vld [vmem:[%s0 + $0x6c] sm:$0xf]
    %v47 = vld [vmem:[%s0 + $0x70] sm:$0xf]
    %v48 = vld [vmem:[%s0 + $0x74] sm:$0xf]
    %v49 = vld [vmem:[%s0 + $0x78] sm:$0xf]
    %v50 = vld [vmem:[%s0 + $0x7c] sm:$0xf]
    %v51 = vld [vmem:[%s0 + $0x80] sm:$0xf]
    %v52 = vld [vmem:[%s0 + $0x84] sm:$0xf]
    %v53 = vld [vmem:[%s0 + $0x88] sm:$0xf]
    %v54 = vld [vmem:[%s0 + $0x8c] sm:$0xf]
    %v55 = vld [vmem:[%s0 + $0x90] sm:$0xf]
    %v56 = vld [vmem:[%s0 + $0x94] sm:$0xf]
    %v57 = vld [vmem:[%s0 + $0x98] sm:$0xf]
    %v58 = vld [vmem:[%s0 + $0x9c] sm:$0xf]
    %v59 = vld [vmem:[%s0 + $0xa0] sm:$0xf]
    %v60 = vld [vmem:[%s0 + $0xa4] sm:$0xf]
    %v61 = vld [vmem:[%s0 + $0xa8] sm:$0xf]
    %v62 = vld [vmem:[%s0 + $0xac] sm:$0xf]
    %v63 = vld [vmem:[%s0 + $0xb0] sm:$0xf]
    %v64 = vld [vmem:[%s0 + $0xb4] sm:$0xf]
    %v65 = vld [vmem:[%s0 + $0xb8] sm:$0xf]
    %v66 = vld [vmem:[%s0 + $0xbc] sm:$0xf]
    %v67 = vld [vmem:[%s0 + $0xc0] sm:$0xf]
    %v68 = vld [vmem:[%s0 + $0xc4] sm:$0xf]
    %v69 = vld [vmem:[%s0 + $0xc8] sm:$0xf]
    %v70 = vld [vmem:[%s0 + $0xcc] sm:$0xf]
    %v71 = vld [vmem:[%s0 + $0xd0] sm:$0xf]
    %v72 = vld [vmem:[%s0 + $0xd4] sm:$0xf]
    %v73 = vld [vmem:[%s0 + $0xd8] sm:$0xf]
    %v74 = vld [vmem:[%s0 + $0xdc] sm:$0xf]
    %v75 = vld [vmem:[%s0 + $0xe0] sm:$0xf]
    %v76 = vld [vmem:[%s0 + $0xe4] sm:$0xf]
    %v77 = vld [vmem:[%s0 + $0xe8] sm:$0xf]
    %v78 = vld [vmem:[%s0 + $0xec] sm:$0xf]
    %v79 = vld [vmem:[%s0 + $0xf0] sm:$0xf]
    %v80 = vld [vmem:[%s0 + $0xf4] sm:$0xf]
    %v81 = vld [vmem:[%s0 + $0xf8] sm:$0xf]
    %v82 = vld [vmem:[%s0 + $0xfc] sm:$0xf]
    %v83 = vld [vmem:[%s3] sm:$0xff]
    %v84 = vld [vmem:[%s2] sm:$0xf]
    %v85 = vld [vmem:[%s2 + $0x4] sm:$0xf]
    %v150 = vunpack.c.l.b16 %v19
    %v151 = vunpack.c.l.b16 %v20
    %v152 = vunpack.c.l.b16 %v21
    %v153 = vunpack.c.l.b16 %v22
    %v154 = vunpack.c.l.b16 %v23
    %v155 = vunpack.c.l.b16 %v24
    %v156 = vunpack.c.l.b16 %v25
    %v157 = vunpack.c.l.b16 %v26
    %v158 = vunpack.c.l.b16 %v27
    %v159 = vunpack.c.l.b16 %v28
    %v160 = vunpack.c.l.b16 %v29
    %v161 = vunpack.c.l.b16 %v30
    %v162 = vunpack.c.l.b16 %v31
    %v163 = vunpack.c.l.b16 %v32
    %v164 = vunpack.c.l.b16 %v33
    %v165 = vunpack.c.l.b16 %v34
    %v166 = vunpack.c.l.b16 %v35
    %v167 = vunpack.c.l.b16 %v36
    %v168 = vunpack.c.l.b16 %v37
    %v169 = vunpack.c.l.b16 %v38
    %v170 = vunpack.c.l.b16 %v39
    %v171 = vunpack.c.l.b16 %v40
    %v172 = vunpack.c.l.b16 %v41
    %v173 = vunpack.c.l.b16 %v42
    %v174 = vunpack.c.l.b16 %v43
    %v175 = vunpack.c.l.b16 %v44
    %v176 = vunpack.c.l.b16 %v45
    %v177 = vunpack.c.l.b16 %v46
    %v178 = vunpack.c.l.b16 %v47
    %v179 = vunpack.c.l.b16 %v48
    %v180 = vunpack.c.l.b16 %v49
    %v181 = vunpack.c.l.b16 %v50
    %v182 = vunpack.c.l.b16 %v51
    %v183 = vunpack.c.l.b16 %v52
    %v184 = vunpack.c.l.b16 %v53
    %v185 = vunpack.c.l.b16 %v54
    %v186 = vunpack.c.l.b16 %v55
    %v187 = vunpack.c.l.b16 %v56
    %v188 = vunpack.c.l.b16 %v57
    %v189 = vunpack.c.l.b16 %v58
    %v190 = vunpack.c.l.b16 %v59
    %v191 = vunpack.c.l.b16 %v60
    %v192 = vunpack.c.l.b16 %v61
    %v193 = vunpack.c.l.b16 %v62
    %v194 = vunpack.c.l.b16 %v63
    %v195 = vunpack.c.l.b16 %v64
    %v196 = vunpack.c.l.b16 %v65
    %v197 = vunpack.c.l.b16 %v66
    %v198 = vunpack.c.l.b16 %v67
    %v199 = vunpack.c.l.b16 %v68
    %v200 = vunpack.c.l.b16 %v69
    %v201 = vunpack.c.l.b16 %v70
    %v202 = vunpack.c.l.b16 %v71
    %v203 = vunpack.c.l.b16 %v72
    %v204 = vunpack.c.l.b16 %v73
    %v205 = vunpack.c.l.b16 %v74
    %v206 = vunpack.c.l.b16 %v75
    %v207 = vunpack.c.l.b16 %v76
    %v208 = vunpack.c.l.b16 %v77
    %v209 = vunpack.c.l.b16 %v78
    %v210 = vunpack.c.l.b16 %v79
    %v211 = vunpack.c.l.b16 %v80
    %v212 = vunpack.c.l.b16 %v81
    %v213 = vunpack.c.l.b16 %v82
    %v214 = vpack.c.b16 %v151, %v150
    %v215 = vpack.c.b16 %v153, %v152
    %v216 = vpack.c.b16 %v155, %v154
    %v217 = vpack.c.b16 %v157, %v156
    %v218 = vpack.c.b16 %v159, %v158
    %v219 = vpack.c.b16 %v161, %v160
    %v220 = vpack.c.b16 %v163, %v162
    %v221 = vpack.c.b16 %v165, %v164
    %v222 = vpack.c.b16 %v167, %v166
    %v223 = vpack.c.b16 %v169, %v168
    %v224 = vpack.c.b16 %v171, %v170
    %v225 = vpack.c.b16 %v173, %v172
    %v226 = vpack.c.b16 %v175, %v174
    %v227 = vpack.c.b16 %v177, %v176
    %v228 = vpack.c.b16 %v179, %v178
    %v229 = vpack.c.b16 %v181, %v180
    %v230 = vpack.c.b16 %v183, %v182
    %v231 = vpack.c.b16 %v185, %v184
    %v232 = vpack.c.b16 %v187, %v186
    %v233 = vpack.c.b16 %v189, %v188
    %v234 = vpack.c.b16 %v191, %v190
    %v235 = vpack.c.b16 %v193, %v192
    %v236 = vpack.c.b16 %v195, %v194
    %v237 = vpack.c.b16 %v197, %v196
    %v238 = vpack.c.b16 %v199, %v198
    %v239 = vpack.c.b16 %v201, %v200
    %v240 = vpack.c.b16 %v203, %v202
    %v241 = vpack.c.b16 %v205, %v204
    %v242 = vpack.c.b16 %v207, %v206
    %v243 = vpack.c.b16 %v209, %v208
    %v244 = vpack.c.b16 %v211, %v210
    %v245 = vpack.c.b16 %v213, %v212
    %v248 = vunpack.c.l.b16 %v84
    %v249 = vunpack.c.l.b16 %v85
    %v250 = vpack.c.b16 %v249, %v248
    %vm252 = vcmask 130048
    %v254 = vsel %vm252, %v214, 0
    %v257 = vsel %vm252, %v215, 0
    %v260 = vsel %vm252, %v216, 0
    %v263 = vsel %vm252, %v217, 0
    %v266 = vsel %vm252, %v218, 0
    %v269 = vsel %vm252, %v219, 0
    %v272 = vsel %vm252, %v220, 0
    %v275 = vsel %vm252, %v221, 0
    %v278 = vsel %vm252, %v222, 0
    %v281 = vsel %vm252, %v223, 0
    %v284 = vsel %vm252, %v224, 0
    %v287 = vsel %vm252, %v225, 0
    %v290 = vsel %vm252, %v226, 0
    %v293 = vsel %vm252, %v227, 0
    %v296 = vsel %vm252, %v228, 0
    %v299 = vsel %vm252, %v229, 0
    %v302 = vsel %vm252, %v230, 0
    %v305 = vsel %vm252, %v231, 0
    %v308 = vsel %vm252, %v232, 0
    %v311 = vsel %vm252, %v233, 0
    %v314 = vsel %vm252, %v234, 0
    %v317 = vsel %vm252, %v235, 0
    %v320 = vsel %vm252, %v236, 0
    %v323 = vsel %vm252, %v237, 0
    %v326 = vsel %vm252, %v238, 0
    %v329 = vsel %vm252, %v239, 0
    %v332 = vsel %vm252, %v240, 0
    %v335 = vsel %vm252, %v241, 0
    %v338 = vsel %vm252, %v242, 0
    %v341 = vsel %vm252, %v243, 0
    %v344 = vsel %vm252, %v244, 0
    %v347 = vsel %vm252, %v245, 0
    %349 = vmatprep.subr.bf16.mxu0 0
    %350 = vmatpush1.bf16.msra.mxu0 %v250
    %351 = vmatprep.subr.bf16.mxu0 0
    %352 = vmatpush1.bf16.msra.mxu0 0
    %353 = vmatprep.subr.bf16.mxu0 0
    %354 = vmatpush1.bf16.msra.mxu0 0
    %355 = vmatprep.subr.bf16.mxu0 0
    %356 = vmatpush1.bf16.msra.mxu0 0
    %357 = vmatprep.subr.bf16.mxu0 0
    %358 = vmatpush1.bf16.msra.mxu0 0
    %359 = vmatprep.subr.bf16.mxu0 0
    %360 = vmatpush1.bf16.msra.mxu0 0
    %361 = vmatprep.subr.bf16.mxu0 0
    %362 = vmatpush1.bf16.msra.mxu0 0
    %363 = vmatprep.subr.bf16.mxu0 0
    %364 = vmatpush1.bf16.msra.mxu0 0
    %365 = vmatprep.subr.bf16.mxu0 0
    %366 = vmatpush1.bf16.msra.mxu0 0
    %367 = vmatprep.subr.bf16.mxu0 0
    %368 = vmatpush1.bf16.msra.mxu0 0
    %369 = vmatprep.subr.bf16.mxu0 0
    %370 = vmatpush1.bf16.msra.mxu0 0
    %371 = vmatprep.subr.bf16.mxu0 0
    %372 = vmatpush1.bf16.msra.mxu0 0
    %373 = vmatprep.subr.bf16.mxu0 0
    %374 = vmatpush1.bf16.msra.mxu0 0
    %375 = vmatprep.subr.bf16.mxu0 0
    %376 = vmatpush1.bf16.msra.mxu0 0
    %377 = vmatprep.subr.bf16.mxu0 0
    %378 = vmatpush1.bf16.msra.mxu0 0
    %379 = vmatprep.subr.bf16.mxu0 0
    %380 = vmatpush1.bf16.msra.mxu0 0
    %381 = vmatprep.mubr.bf16.mxu0 0
    %382 = vmatmul.mubr.bf16.gmra.mrb[0].mxu0 %v254
    %v383 = vpop.f32.mrb[0].mxu0
    %v384 = vadd.f32 0.0, %v383
    %v385 = vpop.f32.mrb[0].mxu0
    %v386 = vpop.f32.mrb[0].mxu0
    %v387 = vadd.f32 0.0, %v386
    %v388 = vpop.f32.mrb[0].mxu0
    %389 = vmatprep.mubr.bf16.mxu0 0
    %390 = vmatmul.mubr.bf16.gmra.mrb[0].mxu0 %v257
    %v391 = vpop.f32.mrb[0].mxu0
    %v392 = vadd.f32 0.0, %v391
    %v393 = vpop.f32.mrb[0].mxu0
    %v394 = vpop.f32.mrb[0].mxu0
    %v395 = vadd.f32 0.0, %v394
    %v396 = vpop.f32.mrb[0].mxu0
    %397 = vmatprep.mubr.bf16.mxu0 0
    %398 = vmatmul.mubr.bf16.gmra.mrb[0].mxu0 %v260
    %v399 = vpop.f32.mrb[0].mxu0
    %v400 = vadd.f32 0.0, %v399
    %v401 = vpop.f32.mrb[0].mxu0
    %v402 = vpop.f32.mrb[0].mxu0
    %v403 = vadd.f32 0.0, %v402
    %v404 = vpop.f32.mrb[0].mxu0
    %405 = vmatprep.mubr.bf16.mxu0 0
    %406 = vmatmul.mubr.bf16.gmra.mrb[0].mxu0 %v263
    %v407 = vpop.f32.mrb[0].mxu0
    %v408 = vadd.f32 0.0, %v407
    %v409 = vpop.f32.mrb[0].mxu0
    %v410 = vpop.f32.mrb[0].mxu0
    %v411 = vadd.f32 0.0, %v410
    %v412 = vpop.f32.mrb[0].mxu0
    %413 = vmatprep.mubr.bf16.mxu0 0
    %414 = vmatmul.mubr.bf16.gmra.mrb[0].mxu0 %v266
    %v415 = vpop.f32.mrb[0].mxu0
    %v416 = vadd.f32 0.0, %v415
    %v417 = vpop.f32.mrb[0].mxu0
    %v418 = vpop.f32.mrb[0].mxu0
    %v419 = vadd.f32 0.0, %v418
    %v420 = vpop.f32.mrb[0].mxu0
    %421 = vmatprep.mubr.bf16.mxu0 0
    %422 = vmatmul.mubr.bf16.gmra.mrb[0].mxu0 %v269
    %v423 = vpop.f32.mrb[0].mxu0
    %v424 = vadd.f32 0.0, %v423
    %v425 = vpop.f32.mrb[0].mxu0
    %v426 = vpop.f32.mrb[0].mxu0
    %v427 = vadd.f32 0.0, %v426
    %v428 = vpop.f32.mrb[0].mxu0
    %429 = vmatprep.mubr.bf16.mxu0 0
    %430 = vmatmul.mubr.bf16.gmra.mrb[0].mxu0 %v272
    %v431 = vpop.f32.mrb[0].mxu0
    %v432 = vadd.f32 0.0, %v431
    %v433 = vpop.f32.mrb[0].mxu0
    %v434 = vpop.f32.mrb[0].mxu0
    %v435 = vadd.f32 0.0, %v434
    %v436 = vpop.f32.mrb[0].mxu0
    %437 = vmatprep.mubr.bf16.mxu0 0
    %438 = vmatmul.mubr.bf16.gmra.mrb[0].mxu0 %v275
    %v439 = vpop.f32.mrb[0].mxu0
    %v440 = vadd.f32 0.0, %v439
    %v441 = vpop.f32.mrb[0].mxu0
    %v442 = vpop.f32.mrb[0].mxu0
    %v443 = vadd.f32 0.0, %v442
    %v444 = vpop.f32.mrb[0].mxu0
    %445 = vmatprep.mubr.bf16.mxu0 0
    %446 = vmatmul.mubr.bf16.gmra.mrb[0].mxu0 %v278
    %v447 = vpop.f32.mrb[0].mxu0
    %v448 = vadd.f32 0.0, %v447
    %v449 = vpop.f32.mrb[0].mxu0
    %v450 = vpop.f32.mrb[0].mxu0
    %v451 = vadd.f32 0.0, %v450
    %v452 = vpop.f32.mrb[0].mxu0
    %453 = vmatprep.mubr.bf16.mxu0 0
    %454 = vmatmul.mubr.bf16.gmra.mrb[0].mxu0 %v281
    %v455 = vpop.f32.mrb[0].mxu0
    %v456 = vadd.f32 0.0, %v455
    %v457 = vpop.f32.mrb[0].mxu0
    %v458 = vpop.f32.mrb[0].mxu0
    %v459 = vadd.f32 0.0, %v458
    %v460 = vpop.f32.mrb[0].mxu0
    %461 = vmatprep.mubr.bf16.mxu0 0
    %462 = vmatmul.mubr.bf16.gmra.mrb[0].mxu0 %v284
    %v463 = vpop.f32.mrb[0].mxu0
    %v464 = vadd.f32 0.0, %v463
    %v465 = vpop.f32.mrb[0].mxu0
    %v466 = vpop.f32.mrb[0].mxu0
    %v467 = vadd.f32 0.0, %v466
    %v468 = vpop.f32.mrb[0].mxu0
    %469 = vmatprep.mubr.bf16.mxu0 0
    %470 = vmatmul.mubr.bf16.gmra.mrb[0].mxu0 %v287
    %v471 = vpop.f32.mrb[0].mxu0
    %v472 = vadd.f32 0.0, %v471
    %v473 = vpop.f32.mrb[0].mxu0
    %v474 = vpop.f32.mrb[0].mxu0
    %v475 = vadd.f32 0.0, %v474
    %v476 = vpop.f32.mrb[0].mxu0
    %477 = vmatprep.mubr.bf16.mxu0 0
    %478 = vmatmul.mubr.bf16.gmra.mrb[0].mxu0 %v290
    %v479 = vpop.f32.mrb[0].mxu0
    %v480 = vadd.f32 0.0, %v479
    %v481 = vpop.f32.mrb[0].mxu0
    %v482 = vpop.f32.mrb[0].mxu0
    %v483 = vadd.f32 0.0, %v482
    %v484 = vpop.f32.mrb[0].mxu0
    %485 = vmatprep.mubr.bf16.mxu0 0
    %486 = vmatmul.mubr.bf16.gmra.mrb[0].mxu0 %v293
    %v487 = vpop.f32.mrb[0].mxu0
    %v488 = vadd.f32 0.0, %v487
    %v489 = vpop.f32.mrb[0].mxu0
    %v490 = vpop.f32.mrb[0].mxu0
    %v491 = vadd.f32 0.0, %v490
    %v492 = vpop.f32.mrb[0].mxu0
    %493 = vmatprep.mubr.bf16.mxu0 0
    %494 = vmatmul.mubr.bf16.gmra.mrb[0].mxu0 %v296
    %v495 = vpop.f32.mrb[0].mxu0
    %v496 = vadd.f32 0.0, %v495
    %v497 = vpop.f32.mrb[0].mxu0
    %v498 = vpop.f32.mrb[0].mxu0
    %v499 = vadd.f32 0.0, %v498
    %v500 = vpop.f32.mrb[0].mxu0
    %501 = vmatprep.mubr.bf16.mxu0 0
    %502 = vmatmul.mubr.bf16.gmra.mrb[0].mxu0 %v299
    %v503 = vpop.f32.mrb[0].mxu0
    %v504 = vadd.f32 0.0, %v503
    %v505 = vpop.f32.mrb[0].mxu0
    %v506 = vpop.f32.mrb[0].mxu0
    %v507 = vadd.f32 0.0, %v506
    %v508 = vpop.f32.mrb[0].mxu0
    %509 = vmatprep.mubr.bf16.mxu0 0
    %510 = vmatmul.mubr.bf16.gmra.mrb[0].mxu0 %v302
    %v511 = vpop.f32.mrb[0].mxu0
    %v512 = vadd.f32 0.0, %v511
    %v513 = vpop.f32.mrb[0].mxu0
    %v514 = vpop.f32.mrb[0].mxu0
    %v515 = vadd.f32 0.0, %v514
    %v516 = vpop.f32.mrb[0].mxu0
    %517 = vmatprep.mubr.bf16.mxu0 0
    %518 = vmatmul.mubr.bf16.gmra.mrb[0].mxu0 %v305
    %v519 = vpop.f32.mrb[0].mxu0
    %v520 = vadd.f32 0.0, %v519
    %v521 = vpop.f32.mrb[0].mxu0
    %v522 = vpop.f32.mrb[0].mxu0
    %v523 = vadd.f32 0.0, %v522
    %v524 = vpop.f32.mrb[0].mxu0
    %525 = vmatprep.mubr.bf16.mxu0 0
    %526 = vmatmul.mubr.bf16.gmra.mrb[0].mxu0 %v308
    %v527 = vpop.f32.mrb[0].mxu0
    %v528 = vadd.f32 0.0, %v527
    %v529 = vpop.f32.mrb[0].mxu0
    %v530 = vpop.f32.mrb[0].mxu0
    %v531 = vadd.f32 0.0, %v530
    %v532 = vpop.f32.mrb[0].mxu0
    %533 = vmatprep.mubr.bf16.mxu0 0
    %534 = vmatmul.mubr.bf16.gmra.mrb[0].mxu0 %v311
    %v535 = vpop.f32.mrb[0].mxu0
    %v536 = vadd.f32 0.0, %v535
    %v537 = vpop.f32.mrb[0].mxu0
    %v538 = vpop.f32.mrb[0].mxu0
    %v539 = vadd.f32 0.0, %v538
    %v540 = vpop.f32.mrb[0].mxu0
    %541 = vmatprep.mubr.bf16.mxu0 0
    %542 = vmatmul.mubr.bf16.gmra.mrb[0].mxu0 %v314
    %v543 = vpop.f32.mrb[0].mxu0
    %v544 = vadd.f32 0.0, %v543
    %v545 = vpop.f32.mrb[0].mxu0
    %v546 = vpop.f32.mrb[0].mxu0
    %v547 = vadd.f32 0.0, %v546
    %v548 = vpop.f32.mrb[0].mxu0
    %549 = vmatprep.mubr.bf16.mxu0 0
    %550 = vmatmul.mubr.bf16.gmra.mrb[0].mxu0 %v317
    %v551 = vpop.f32.mrb[0].mxu0
    %v552 = vadd.f32 0.0, %v551
    %v553 = vpop.f32.mrb[0].mxu0
    %v554 = vpop.f32.mrb[0].mxu0
    %v555 = vadd.f32 0.0, %v554
    %v556 = vpop.f32.mrb[0].mxu0
    %557 = vmatprep.mubr.bf16.mxu0 0
    %558 = vmatmul.mubr.bf16.gmra.mrb[0].mxu0 %v320
    %v559 = vpop.f32.mrb[0].mxu0
    %v560 = vadd.f32 0.0, %v559
    %v561 = vpop.f32.mrb[0].mxu0
    %v562 = vpop.f32.mrb[0].mxu0
    %v563 = vadd.f32 0.0, %v562
    %v564 = vpop.f32.mrb[0].mxu0
    %565 = vmatprep.mubr.bf16.mxu0 0
    %566 = vmatmul.mubr.bf16.gmra.mrb[0].mxu0 %v323
    %v567 = vpop.f32.mrb[0].mxu0
    %v568 = vadd.f32 0.0, %v567
    %v569 = vpop.f32.mrb[0].mxu0
    %v570 = vpop.f32.mrb[0].mxu0
    %v571 = vadd.f32 0.0, %v570
    %v572 = vpop.f32.mrb[0].mxu0
    %573 = vmatprep.mubr.bf16.mxu0 0
    %574 = vmatmul.mubr.bf16.gmra.mrb[0].mxu0 %v326
    %v575 = vpop.f32.mrb[0].mxu0
    %v576 = vadd.f32 0.0, %v575
    %v577 = vpop.f32.mrb[0].mxu0
    %v578 = vpop.f32.mrb[0].mxu0
    %v579 = vadd.f32 0.0, %v578
    %v580 = vpop.f32.mrb[0].mxu0
    %581 = vmatprep.mubr.bf16.mxu0 0
    %582 = vmatmul.mubr.bf16.gmra.mrb[0].mxu0 %v329
    %v583 = vpop.f32.mrb[0].mxu0
    %v584 = vadd.f32 0.0, %v583
    %v585 = vpop.f32.mrb[0].mxu0
    %v586 = vpop.f32.mrb[0].mxu0
    %v587 = vadd.f32 0.0, %v586
    %v588 = vpop.f32.mrb[0].mxu0
    %589 = vmatprep.mubr.bf16.mxu0 0
    %590 = vmatmul.mubr.bf16.gmra.mrb[0].mxu0 %v332
    %v591 = vpop.f32.mrb[0].mxu0
    %v592 = vadd.f32 0.0, %v591
    %v593 = vpop.f32.mrb[0].mxu0
    %v594 = vpop.f32.mrb[0].mxu0
    %v595 = vadd.f32 0.0, %v594
    %v596 = vpop.f32.mrb[0].mxu0
    %597 = vmatprep.mubr.bf16.mxu0 0
    %598 = vmatmul.mubr.bf16.gmra.mrb[0].mxu0 %v335
    %v599 = vpop.f32.mrb[0].mxu0
    %v600 = vadd.f32 0.0, %v599
    %v601 = vpop.f32.mrb[0].mxu0
    %v602 = vpop.f32.mrb[0].mxu0
    %v603 = vadd.f32 0.0, %v602
    %v604 = vpop.f32.mrb[0].mxu0
    %605 = vmatprep.mubr.bf16.mxu0 0
    %606 = vmatmul.mubr.bf16.gmra.mrb[0].mxu0 %v338
    %v607 = vpop.f32.mrb[0].mxu0
    %v608 = vadd.f32 0.0, %v607
    %v609 = vpop.f32.mrb[0].mxu0
    %v610 = vpop.f32.mrb[0].mxu0
    %v611 = vadd.f32 0.0, %v610
    %v612 = vpop.f32.mrb[0].mxu0
    %613 = vmatprep.mubr.bf16.mxu0 0
    %614 = vmatmul.mubr.bf16.gmra.mrb[0].mxu0 %v341
    %v615 = vpop.f32.mrb[0].mxu0
    %v616 = vadd.f32 0.0, %v615
    %v617 = vpop.f32.mrb[0].mxu0
    %v618 = vpop.f32.mrb[0].mxu0
    %v619 = vadd.f32 0.0, %v618
    %v620 = vpop.f32.mrb[0].mxu0
    %621 = vmatprep.mubr.bf16.mxu0 0
    %622 = vmatmul.mubr.bf16.gmra.mrb[0].mxu0 %v344
    %v623 = vpop.f32.mrb[0].mxu0
    %v624 = vadd.f32 0.0, %v623
    %v625 = vpop.f32.mrb[0].mxu0
    %v626 = vpop.f32.mrb[0].mxu0
    %v627 = vadd.f32 0.0, %v626
    %v628 = vpop.f32.mrb[0].mxu0
    %629 = vmatprep.mubr.bf16.mxu0 0
    %630 = vmatmul.mubr.bf16.gmra.mrb[0].mxu0 %v347
    %v631 = vpop.f32.mrb[0].mxu0
    %v632 = vadd.f32 0.0, %v631
    %v633 = vpop.f32.mrb[0].mxu0
    %v634 = vpop.f32.mrb[0].mxu0
    %v635 = vadd.f32 0.0, %v634
    %v636 = vpop.f32.mrb[0].mxu0
    %637 = vdwg.mxu0
    %v638 = vmax.f32 %v384, 0.0
    %v639 = vmax.f32 %v387, 0.0
    %v640 = vmax.f32 %v392, 0.0
    %v641 = vmax.f32 %v395, 0.0
    %v642 = vmax.f32 %v400, 0.0
    %v643 = vmax.f32 %v403, 0.0
    %v644 = vmax.f32 %v408, 0.0
    %v645 = vmax.f32 %v411, 0.0
    %v646 = vmax.f32 %v416, 0.0
    %v647 = vmax.f32 %v419, 0.0
    %v648 = vmax.f32 %v424, 0.0
    %v649 = vmax.f32 %v427, 0.0
    %v650 = vmax.f32 %v432, 0.0
    %v651 = vmax.f32 %v435, 0.0
    %v652 = vmax.f32 %v440, 0.0
    %v653 = vmax.f32 %v443, 0.0
    %v654 = vmax.f32 %v448, 0.0
    %v655 = vmax.f32 %v451, 0.0
    %v656 = vmax.f32 %v456, 0.0
    %v657 = vmax.f32 %v459, 0.0
    %v658 = vmax.f32 %v464, 0.0
    %v659 = vmax.f32 %v467, 0.0
    %v660 = vmax.f32 %v472, 0.0
    %v661 = vmax.f32 %v475, 0.0
    %v662 = vmax.f32 %v480, 0.0
    %v663 = vmax.f32 %v483, 0.0
    %v664 = vmax.f32 %v488, 0.0
    %v665 = vmax.f32 %v491, 0.0
    %v666 = vmax.f32 %v496, 0.0
    %v667 = vmax.f32 %v499, 0.0
    %v668 = vmax.f32 %v504, 0.0
    %v669 = vmax.f32 %v507, 0.0
    %v670 = vmax.f32 %v512, 0.0
    %v671 = vmax.f32 %v515, 0.0
    %v672 = vmax.f32 %v520, 0.0
    %v673 = vmax.f32 %v523, 0.0
    %v674 = vmax.f32 %v528, 0.0
    %v675 = vmax.f32 %v531, 0.0
    %v676 = vmax.f32 %v536, 0.0
    %v677 = vmax.f32 %v539, 0.0
    %v678 = vmax.f32 %v544, 0.0
    %v679 = vmax.f32 %v547, 0.0
    %v680 = vmax.f32 %v552, 0.0
    %v681 = vmax.f32 %v555, 0.0
    %v682 = vmax.f32 %v560, 0.0
    %v683 = vmax.f32 %v563, 0.0
    %v684 = vmax.f32 %v568, 0.0
    %v685 = vmax.f32 %v571, 0.0
    %v686 = vmax.f32 %v576, 0.0
    %v687 = vmax.f32 %v579, 0.0
    %v688 = vmax.f32 %v584, 0.0
    %v689 = vmax.f32 %v587, 0.0
    %v690 = vmax.f32 %v592, 0.0
    %v691 = vmax.f32 %v595, 0.0
    %v692 = vmax.f32 %v600, 0.0
    %v693 = vmax.f32 %v603, 0.0
    %v694 = vmax.f32 %v608, 0.0
    %v695 = vmax.f32 %v611, 0.0
    %v696 = vmax.f32 %v616, 0.0
    %v697 = vmax.f32 %v619, 0.0
    %v698 = vmax.f32 %v624, 0.0
    %v699 = vmax.f32 %v627, 0.0
    %v700 = vmax.f32 %v632, 0.0
    %v701 = vmax.f32 %v635, 0.0
    %v702 = vpack.c.bf16 %v639, %v638
    %v703 = vpack.c.bf16 %v641, %v640
    %v704 = vpack.c.bf16 %v643, %v642
    %v705 = vpack.c.bf16 %v645, %v644
    %v706 = vpack.c.bf16 %v647, %v646
    %v707 = vpack.c.bf16 %v649, %v648
    %v708 = vpack.c.bf16 %v651, %v650
    %v709 = vpack.c.bf16 %v653, %v652
    %v710 = vpack.c.bf16 %v655, %v654
    %v711 = vpack.c.bf16 %v657, %v656
    %v712 = vpack.c.bf16 %v659, %v658
    %v713 = vpack.c.bf16 %v661, %v660
    %v714 = vpack.c.bf16 %v663, %v662
    %v715 = vpack.c.bf16 %v665, %v664
    %v716 = vpack.c.bf16 %v667, %v666
    %v717 = vpack.c.bf16 %v669, %v668
    %v718 = vpack.c.bf16 %v671, %v670
    %v719 = vpack.c.bf16 %v673, %v672
    %v720 = vpack.c.bf16 %v675, %v674
    %v721 = vpack.c.bf16 %v677, %v676
    %v722 = vpack.c.bf16 %v679, %v678
    %v723 = vpack.c.bf16 %v681, %v680
    %v724 = vpack.c.bf16 %v683, %v682
    %v725 = vpack.c.bf16 %v685, %v684
    %v726 = vpack.c.bf16 %v687, %v686
    %v727 = vpack.c.bf16 %v689, %v688
    %v728 = vpack.c.bf16 %v691, %v690
    %v729 = vpack.c.bf16 %v693, %v692
    %v730 = vpack.c.bf16 %v695, %v694
    %v731 = vpack.c.bf16 %v697, %v696
    %v732 = vpack.c.bf16 %v699, %v698
    %v733 = vpack.c.bf16 %v701, %v700
    %v734 = vld [vmem:[%s2 + $0x8] sm:$0xf]
    %v735 = vld [vmem:[%s2 + $0xc] sm:$0xf]
    %v736 = vld [vmem:[%s2 + $0x10] sm:$0xf]
    %v737 = vld [vmem:[%s2 + $0x14] sm:$0xf]
    %v738 = vld [vmem:[%s2 + $0x18] sm:$0xf]
    %v739 = vld [vmem:[%s2 + $0x1c] sm:$0xf]
    %v740 = vld [vmem:[%s2 + $0x20] sm:$0xf]
    %v741 = vld [vmem:[%s2 + $0x24] sm:$0xf]
    %v742 = vld [vmem:[%s2 + $0x28] sm:$0xf]
    %v743 = vld [vmem:[%s2 + $0x2c] sm:$0xf]
    %v744 = vld [vmem:[%s2 + $0x30] sm:$0xf]
    %v745 = vld [vmem:[%s2 + $0x34] sm:$0xf]
    %v746 = vld [vmem:[%s2 + $0x38] sm:$0xf]
    %v747 = vld [vmem:[%s2 + $0x3c] sm:$0xf]
    %v748 = vld [vmem:[%s2 + $0x40] sm:$0xf]
    %v749 = vld [vmem:[%s2 + $0x44] sm:$0xf]
    %v766 = vunpack.c.l.b16 %v734
    %v767 = vunpack.c.l.b16 %v735
    %v768 = vunpack.c.l.b16 %v736
    %v769 = vunpack.c.l.b16 %v737
    %v770 = vunpack.c.l.b16 %v738
    %v771 = vunpack.c.l.b16 %v739
    %v772 = vunpack.c.l.b16 %v740
    %v773 = vunpack.c.l.b16 %v741
    %v774 = vunpack.c.l.b16 %v742
    %v775 = vunpack.c.l.b16 %v743
    %v776 = vunpack.c.l.b16 %v744
    %v777 = vunpack.c.l.b16 %v745
    %v778 = vunpack.c.l.b16 %v746
    %v779 = vunpack.c.l.b16 %v747
    %v780 = vunpack.c.l.b16 %v748
    %v781 = vunpack.c.l.b16 %v749
    %v782 = vpack.c.b16 %v767, %v766
    %v783 = vpack.c.b16 %v769, %v768
    %v784 = vpack.c.b16 %v771, %v770
    %v785 = vpack.c.b16 %v773, %v772
    %v786 = vpack.c.b16 %v775, %v774
    %v787 = vpack.c.b16 %v777, %v776
    %v788 = vpack.c.b16 %v779, %v778
    %v789 = vpack.c.b16 %v781, %v780
    %798 = vmatprep.subr.bf16.mxu0 0
    %799 = vmatpush1.bf16.msra.mxu0 %v782
    %800 = vmatprep.subr.bf16.mxu0 0
    %801 = vmatpush1.bf16.msra.mxu0 %v783
    %802 = vmatprep.subr.bf16.mxu0 0
    %803 = vmatpush1.bf16.msra.mxu0 %v784
    %804 = vmatprep.subr.bf16.mxu0 0
    %805 = vmatpush1.bf16.msra.mxu0 %v785
    %806 = vmatprep.subr.bf16.mxu0 0
    %807 = vmatpush1.bf16.msra.mxu0 %v786
    %808 = vmatprep.subr.bf16.mxu0 0
    %809 = vmatpush1.bf16.msra.mxu0 %v787
    %810 = vmatprep.subr.bf16.mxu0 0
    %811 = vmatpush1.bf16.msra.mxu0 %v788
    %812 = vmatprep.subr.bf16.mxu0 0
    %813 = vmatpush1.bf16.msra.mxu0 %v789
    %814 = vmatprep.subr.bf16.mxu0 0
    %815 = vmatpush1.bf16.msra.mxu0 0
    %816 = vmatprep.subr.bf16.mxu0 0
    %817 = vmatpush1.bf16.msra.mxu0 0
    %818 = vmatprep.subr.bf16.mxu0 0
    %819 = vmatpush1.bf16.msra.mxu0 0
    %820 = vmatprep.subr.bf16.mxu0 0
    %821 = vmatpush1.bf16.msra.mxu0 0
    %822 = vmatprep.subr.bf16.mxu0 0
    %823 = vmatpush1.bf16.msra.mxu0 0
    %824 = vmatprep.subr.bf16.mxu0 0
    %825 = vmatpush1.bf16.msra.mxu0 0
    %826 = vmatprep.subr.bf16.mxu0 0
    %827 = vmatpush1.bf16.msra.mxu0 0
    %828 = vmatprep.subr.bf16.mxu0 0
    %829 = vmatpush1.bf16.msra.mxu0 0
    %830 = vmatprep.mubr.bf16.mxu0 0
    %831 = vmatmul.mubr.bf16.gmra.mrb[0].mxu0 %v702
    %v832 = vpop.f32.mrb[0].mxu0
    %v833 = vadd.f32 0.0, %v832
    %v834 = vpop.f32.mrb[0].mxu0
    %v835 = vpop.f32.mrb[0].mxu0
    %v836 = vadd.f32 0.0, %v835
    %v837 = vpop.f32.mrb[0].mxu0
    %838 = vmatprep.mubr.bf16.mxu0 0
    %839 = vmatmul.mubr.bf16.gmra.mrb[0].mxu0 %v703
    %v840 = vpop.f32.mrb[0].mxu0
    %v841 = vadd.f32 0.0, %v840
    %v842 = vpop.f32.mrb[0].mxu0
    %v843 = vpop.f32.mrb[0].mxu0
    %v844 = vadd.f32 0.0, %v843
    %v845 = vpop.f32.mrb[0].mxu0
    %846 = vmatprep.mubr.bf16.mxu0 0
    %847 = vmatmul.mubr.bf16.gmra.mrb[0].mxu0 %v704
    %v848 = vpop.f32.mrb[0].mxu0
    %v849 = vadd.f32 0.0, %v848
    %v850 = vpop.f32.mrb[0].mxu0
    %v851 = vpop.f32.mrb[0].mxu0
    %v852 = vadd.f32 0.0, %v851
    %v853 = vpop.f32.mrb[0].mxu0
    %854 = vmatprep.mubr.bf16.mxu0 0
    %855 = vmatmul.mubr.bf16.gmra.mrb[0].mxu0 %v705
    %v856 = vpop.f32.mrb[0].mxu0
    %v857 = vadd.f32 0.0, %v856
    %v858 = vpop.f32.mrb[0].mxu0
    %v859 = vpop.f32.mrb[0].mxu0
    %v860 = vadd.f32 0.0, %v859
    %v861 = vpop.f32.mrb[0].mxu0
    %862 = vmatprep.mubr.bf16.mxu0 0
    %863 = vmatmul.mubr.bf16.gmra.mrb[0].mxu0 %v706
    %v864 = vpop.f32.mrb[0].mxu0
    %v865 = vadd.f32 0.0, %v864
    %v866 = vpop.f32.mrb[0].mxu0
    %v867 = vpop.f32.mrb[0].mxu0
    %v868 = vadd.f32 0.0, %v867
    %v869 = vpop.f32.mrb[0].mxu0
    %870 = vmatprep.mubr.bf16.mxu0 0
    %871 = vmatmul.mubr.bf16.gmra.mrb[0].mxu0 %v707
    %v872 = vpop.f32.mrb[0].mxu0
    %v873 = vadd.f32 0.0, %v872
    %v874 = vpop.f32.mrb[0].mxu0
    %v875 = vpop.f32.mrb[0].mxu0
    %v876 = vadd.f32 0.0, %v875
    %v877 = vpop.f32.mrb[0].mxu0
    %878 = vmatprep.mubr.bf16.mxu0 0
    %879 = vmatmul.mubr.bf16.gmra.mrb[0].mxu0 %v708
    %v880 = vpop.f32.mrb[0].mxu0
    %v881 = vadd.f32 0.0, %v880
    %v882 = vpop.f32.mrb[0].mxu0
    %v883 = vpop.f32.mrb[0].mxu0
    %v884 = vadd.f32 0.0, %v883
    %v885 = vpop.f32.mrb[0].mxu0
    %886 = vmatprep.mubr.bf16.mxu0 0
    %887 = vmatmul.mubr.bf16.gmra.mrb[0].mxu0 %v709
    %v888 = vpop.f32.mrb[0].mxu0
    %v889 = vadd.f32 0.0, %v888
    %v890 = vpop.f32.mrb[0].mxu0
    %v891 = vpop.f32.mrb[0].mxu0
    %v892 = vadd.f32 0.0, %v891
    %v893 = vpop.f32.mrb[0].mxu0
    %894 = vmatprep.mubr.bf16.mxu0 0
    %895 = vmatmul.mubr.bf16.gmra.mrb[0].mxu0 %v710
    %v896 = vpop.f32.mrb[0].mxu0
    %v897 = vadd.f32 0.0, %v896
    %v898 = vpop.f32.mrb[0].mxu0
    %v899 = vpop.f32.mrb[0].mxu0
    %v900 = vadd.f32 0.0, %v899
    %v901 = vpop.f32.mrb[0].mxu0
    %902 = vmatprep.mubr.bf16.mxu0 0
    %903 = vmatmul.mubr.bf16.gmra.mrb[0].mxu0 %v711
    %v904 = vpop.f32.mrb[0].mxu0
    %v905 = vadd.f32 0.0, %v904
    %v906 = vpop.f32.mrb[0].mxu0
    %v907 = vpop.f32.mrb[0].mxu0
    %v908 = vadd.f32 0.0, %v907
    %v909 = vpop.f32.mrb[0].mxu0
    %910 = vmatprep.mubr.bf16.mxu0 0
    %911 = vmatmul.mubr.bf16.gmra.mrb[0].mxu0 %v712
    %v912 = vpop.f32.mrb[0].mxu0
    %v913 = vadd.f32 0.0, %v912
    %v914 = vpop.f32.mrb[0].mxu0
    %v915 = vpop.f32.mrb[0].mxu0
    %v916 = vadd.f32 0.0, %v915
    %v917 = vpop.f32.mrb[0].mxu0
    %918 = vmatprep.mubr.bf16.mxu0 0
    %919 = vmatmul.mubr.bf16.gmra.mrb[0].mxu0 %v713
    %v920 = vpop.f32.mrb[0].mxu0
    %v921 = vadd.f32 0.0, %v920
    %v922 = vpop.f32.mrb[0].mxu0
    %v923 = vpop.f32.mrb[0].mxu0
    %v924 = vadd.f32 0.0, %v923
    %v925 = vpop.f32.mrb[0].mxu0
    %926 = vmatprep.mubr.bf16.mxu0 0
    %927 = vmatmul.mubr.bf16.gmra.mrb[0].mxu0 %v714
    %v928 = vpop.f32.mrb[0].mxu0
    %v929 = vadd.f32 0.0, %v928
    %v930 = vpop.f32.mrb[0].mxu0
    %v931 = vpop.f32.mrb[0].mxu0
    %v932 = vadd.f32 0.0, %v931
    %v933 = vpop.f32.mrb[0].mxu0
    %934 = vmatprep.mubr.bf16.mxu0 0
    %935 = vmatmul.mubr.bf16.gmra.mrb[0].mxu0 %v715
    %v936 = vpop.f32.mrb[0].mxu0
    %v937 = vadd.f32 0.0, %v936
    %v938 = vpop.f32.mrb[0].mxu0
    %v939 = vpop.f32.mrb[0].mxu0
    %v940 = vadd.f32 0.0, %v939
    %v941 = vpop.f32.mrb[0].mxu0
    %942 = vmatprep.mubr.bf16.mxu0 0
    %943 = vmatmul.mubr.bf16.gmra.mrb[0].mxu0 %v716
    %v944 = vpop.f32.mrb[0].mxu0
    %v945 = vadd.f32 0.0, %v944
    %v946 = vpop.f32.mrb[0].mxu0
    %v947 = vpop.f32.mrb[0].mxu0
    %v948 = vadd.f32 0.0, %v947
    %v949 = vpop.f32.mrb[0].mxu0
    %950 = vmatprep.mubr.bf16.mxu0 0
    %951 = vmatmul.mubr.bf16.gmra.mrb[0].mxu0 %v717
    %v952 = vpop.f32.mrb[0].mxu0
    %v953 = vadd.f32 0.0, %v952
    %v954 = vpop.f32.mrb[0].mxu0
    %v955 = vpop.f32.mrb[0].mxu0
    %v956 = vadd.f32 0.0, %v955
    %v957 = vpop.f32.mrb[0].mxu0
    %958 = vmatprep.mubr.bf16.mxu0 0
    %959 = vmatmul.mubr.bf16.gmra.mrb[0].mxu0 %v718
    %v960 = vpop.f32.mrb[0].mxu0
    %v961 = vadd.f32 0.0, %v960
    %v962 = vpop.f32.mrb[0].mxu0
    %v963 = vpop.f32.mrb[0].mxu0
    %v964 = vadd.f32 0.0, %v963
    %v965 = vpop.f32.mrb[0].mxu0
    %966 = vmatprep.mubr.bf16.mxu0 0
    %967 = vmatmul.mubr.bf16.gmra.mrb[0].mxu0 %v719
    %v968 = vpop.f32.mrb[0].mxu0
    %v969 = vadd.f32 0.0, %v968
    %v970 = vpop.f32.mrb[0].mxu0
    %v971 = vpop.f32.mrb[0].mxu0
    %v972 = vadd.f32 0.0, %v971
    %v973 = vpop.f32.mrb[0].mxu0
    %974 = vmatprep.mubr.bf16.mxu0 0
    %975 = vmatmul.mubr.bf16.gmra.mrb[0].mxu0 %v720
    %v976 = vpop.f32.mrb[0].mxu0
    %v977 = vadd.f32 0.0, %v976
    %v978 = vpop.f32.mrb[0].mxu0
    %v979 = vpop.f32.mrb[0].mxu0
    %v980 = vadd.f32 0.0, %v979
    %v981 = vpop.f32.mrb[0].mxu0
    %982 = vmatprep.mubr.bf16.mxu0 0
    %983 = vmatmul.mubr.bf16.gmra.mrb[0].mxu0 %v721
    %v984 = vpop.f32.mrb[0].mxu0
    %v985 = vadd.f32 0.0, %v984
    %v986 = vpop.f32.mrb[0].mxu0
    %v987 = vpop.f32.mrb[0].mxu0
    %v988 = vadd.f32 0.0, %v987
    %v989 = vpop.f32.mrb[0].mxu0
    %990 = vmatprep.mubr.bf16.mxu0 0
    %991 = vmatmul.mubr.bf16.gmra.mrb[0].mxu0 %v722
    %v992 = vpop.f32.mrb[0].mxu0
    %v993 = vadd.f32 0.0, %v992
    %v994 = vpop.f32.mrb[0].mxu0
    %v995 = vpop.f32.mrb[0].mxu0
    %v996 = vadd.f32 0.0, %v995
    %v997 = vpop.f32.mrb[0].mxu0
    %998 = vmatprep.mubr.bf16.mxu0 0
    %999 = vmatmul.mubr.bf16.gmra.mrb[0].mxu0 %v723
    %v1000 = vpop.f32.mrb[0].mxu0
    %v1001 = vadd.f32 0.0, %v1000
    %v1002 = vpop.f32.mrb[0].mxu0
    %v1003 = vpop.f32.mrb[0].mxu0
    %v1004 = vadd.f32 0.0, %v1003
    %v1005 = vpop.f32.mrb[0].mxu0
    %1006 = vmatprep.mubr.bf16.mxu0 0
    %1007 = vmatmul.mubr.bf16.gmra.mrb[0].mxu0 %v724
    %v1008 = vpop.f32.mrb[0].mxu0
    %v1009 = vadd.f32 0.0, %v1008
    %v1010 = vpop.f32.mrb[0].mxu0
    %v1011 = vpop.f32.mrb[0].mxu0
    %v1012 = vadd.f32 0.0, %v1011
    %v1013 = vpop.f32.mrb[0].mxu0
    %1014 = vmatprep.mubr.bf16.mxu0 0
    %1015 = vmatmul.mubr.bf16.gmra.mrb[0].mxu0 %v725
    %v1016 = vpop.f32.mrb[0].mxu0
    %v1017 = vadd.f32 0.0, %v1016
    %v1018 = vpop.f32.mrb[0].mxu0
    %v1019 = vpop.f32.mrb[0].mxu0
    %v1020 = vadd.f32 0.0, %v1019
    %v1021 = vpop.f32.mrb[0].mxu0
    %1022 = vmatprep.mubr.bf16.mxu0 0
    %1023 = vmatmul.mubr.bf16.gmra.mrb[0].mxu0 %v726
    %v1024 = vpop.f32.mrb[0].mxu0
    %v1025 = vadd.f32 0.0, %v1024
    %v1026 = vpop.f32.mrb[0].mxu0
    %v1027 = vpop.f32.mrb[0].mxu0
    %v1028 = vadd.f32 0.0, %v1027
    %v1029 = vpop.f32.mrb[0].mxu0
    %1030 = vmatprep.mubr.bf16.mxu0 0
    %1031 = vmatmul.mubr.bf16.gmra.mrb[0].mxu0 %v727
    %v1032 = vpop.f32.mrb[0].mxu0
    %v1033 = vadd.f32 0.0, %v1032
    %v1034 = vpop.f32.mrb[0].mxu0
    %v1035 = vpop.f32.mrb[0].mxu0
    %v1036 = vadd.f32 0.0, %v1035
    %v1037 = vpop.f32.mrb[0].mxu0
    %1038 = vmatprep.mubr.bf16.mxu0 0
    %1039 = vmatmul.mubr.bf16.gmra.mrb[0].mxu0 %v728
    %v1040 = vpop.f32.mrb[0].mxu0
    %v1041 = vadd.f32 0.0, %v1040
    %v1042 = vpop.f32.mrb[0].mxu0
    %v1043 = vpop.f32.mrb[0].mxu0
    %v1044 = vadd.f32 0.0, %v1043
    %v1045 = vpop.f32.mrb[0].mxu0
    %1046 = vmatprep.mubr.bf16.mxu0 0
    %1047 = vmatmul.mubr.bf16.gmra.mrb[0].mxu0 %v729
    %v1048 = vpop.f32.mrb[0].mxu0
    %v1049 = vadd.f32 0.0, %v1048
    %v1050 = vpop.f32.mrb[0].mxu0
    %v1051 = vpop.f32.mrb[0].mxu0
    %v1052 = vadd.f32 0.0, %v1051
    %v1053 = vpop.f32.mrb[0].mxu0
    %1054 = vmatprep.mubr.bf16.mxu0 0
    %1055 = vmatmul.mubr.bf16.gmra.mrb[0].mxu0 %v730
    %v1056 = vpop.f32.mrb[0].mxu0
    %v1057 = vadd.f32 0.0, %v1056
    %v1058 = vpop.f32.mrb[0].mxu0
    %v1059 = vpop.f32.mrb[0].mxu0
    %v1060 = vadd.f32 0.0, %v1059
    %v1061 = vpop.f32.mrb[0].mxu0
    %1062 = vmatprep.mubr.bf16.mxu0 0
    %1063 = vmatmul.mubr.bf16.gmra.mrb[0].mxu0 %v731
    %v1064 = vpop.f32.mrb[0].mxu0
    %v1065 = vadd.f32 0.0, %v1064
    %v1066 = vpop.f32.mrb[0].mxu0
    %v1067 = vpop.f32.mrb[0].mxu0
    %v1068 = vadd.f32 0.0, %v1067
    %v1069 = vpop.f32.mrb[0].mxu0
    %1070 = vmatprep.mubr.bf16.mxu0 0
    %1071 = vmatmul.mubr.bf16.gmra.mrb[0].mxu0 %v732
    %v1072 = vpop.f32.mrb[0].mxu0
    %v1073 = vadd.f32 0.0, %v1072
    %v1074 = vpop.f32.mrb[0].mxu0
    %v1075 = vpop.f32.mrb[0].mxu0
    %v1076 = vadd.f32 0.0, %v1075
    %v1077 = vpop.f32.mrb[0].mxu0
    %1078 = vmatprep.mubr.bf16.mxu0 0
    %1079 = vmatmul.mubr.bf16.gmra.mrb[0].mxu0 %v733
    %v1080 = vpop.f32.mrb[0].mxu0
    %v1081 = vadd.f32 0.0, %v1080
    %v1082 = vpop.f32.mrb[0].mxu0
    %v1083 = vpop.f32.mrb[0].mxu0
    %v1084 = vadd.f32 0.0, %v1083
    %v1085 = vpop.f32.mrb[0].mxu0
    %1086 = vdwg.mxu0
    %v1087 = vmax.f32 %v833, 0.0
    %v1088 = vmax.f32 %v836, 0.0
    %v1089 = vmax.f32 %v841, 0.0
    %v1090 = vmax.f32 %v844, 0.0
    %v1091 = vmax.f32 %v849, 0.0
    %v1092 = vmax.f32 %v852, 0.0
    %v1093 = vmax.f32 %v857, 0.0
    %v1094 = vmax.f32 %v860, 0.0
    %v1095 = vmax.f32 %v865, 0.0
    %v1096 = vmax.f32 %v868, 0.0
    %v1097 = vmax.f32 %v873, 0.0
    %v1098 = vmax.f32 %v876, 0.0
    %v1099 = vmax.f32 %v881, 0.0
    %v1100 = vmax.f32 %v884, 0.0
    %v1101 = vmax.f32 %v889, 0.0
    %v1102 = vmax.f32 %v892, 0.0
    %v1103 = vmax.f32 %v897, 0.0
    %v1104 = vmax.f32 %v900, 0.0
    %v1105 = vmax.f32 %v905, 0.0
    %v1106 = vmax.f32 %v908, 0.0
    %v1107 = vmax.f32 %v913, 0.0
    %v1108 = vmax.f32 %v916, 0.0
    %v1109 = vmax.f32 %v921, 0.0
    %v1110 = vmax.f32 %v924, 0.0
    %v1111 = vmax.f32 %v929, 0.0
    %v1112 = vmax.f32 %v932, 0.0
    %v1113 = vmax.f32 %v937, 0.0
    %v1114 = vmax.f32 %v940, 0.0
    %v1115 = vmax.f32 %v945, 0.0
    %v1116 = vmax.f32 %v948, 0.0
    %v1117 = vmax.f32 %v953, 0.0
    %v1118 = vmax.f32 %v956, 0.0
    %v1119 = vmax.f32 %v961, 0.0
    %v1120 = vmax.f32 %v964, 0.0
    %v1121 = vmax.f32 %v969, 0.0
    %v1122 = vmax.f32 %v972, 0.0
    %v1123 = vmax.f32 %v977, 0.0
    %v1124 = vmax.f32 %v980, 0.0
    %v1125 = vmax.f32 %v985, 0.0
    %v1126 = vmax.f32 %v988, 0.0
    %v1127 = vmax.f32 %v993, 0.0
    %v1128 = vmax.f32 %v996, 0.0
    %v1129 = vmax.f32 %v1001, 0.0
    %v1130 = vmax.f32 %v1004, 0.0
    %v1131 = vmax.f32 %v1009, 0.0
    %v1132 = vmax.f32 %v1012, 0.0
    %v1133 = vmax.f32 %v1017, 0.0
    %v1134 = vmax.f32 %v1020, 0.0
    %v1135 = vmax.f32 %v1025, 0.0
    %v1136 = vmax.f32 %v1028, 0.0
    %v1137 = vmax.f32 %v1033, 0.0
    %v1138 = vmax.f32 %v1036, 0.0
    %v1139 = vmax.f32 %v1041, 0.0
    %v1140 = vmax.f32 %v1044, 0.0
    %v1141 = vmax.f32 %v1049, 0.0
    %v1142 = vmax.f32 %v1052, 0.0
    %v1143 = vmax.f32 %v1057, 0.0
    %v1144 = vmax.f32 %v1060, 0.0
    %v1145 = vmax.f32 %v1065, 0.0
    %v1146 = vmax.f32 %v1068, 0.0
    %v1147 = vmax.f32 %v1073, 0.0
    %v1148 = vmax.f32 %v1076, 0.0
    %v1149 = vmax.f32 %v1081, 0.0
    %v1150 = vmax.f32 %v1084, 0.0
    %v1151 = vpack.c.bf16 %v1088, %v1087
    %v1152 = vpack.c.bf16 %v1090, %v1089
    %v1153 = vpack.c.bf16 %v1092, %v1091
    %v1154 = vpack.c.bf16 %v1094, %v1093
    %v1155 = vpack.c.bf16 %v1096, %v1095
    %v1156 = vpack.c.bf16 %v1098, %v1097
    %v1157 = vpack.c.bf16 %v1100, %v1099
    %v1158 = vpack.c.bf16 %v1102, %v1101
    %v1159 = vpack.c.bf16 %v1104, %v1103
    %v1160 = vpack.c.bf16 %v1106, %v1105
    %v1161 = vpack.c.bf16 %v1108, %v1107
    %v1162 = vpack.c.bf16 %v1110, %v1109
    %v1163 = vpack.c.bf16 %v1112, %v1111
    %v1164 = vpack.c.bf16 %v1114, %v1113
    %v1165 = vpack.c.bf16 %v1116, %v1115
    %v1166 = vpack.c.bf16 %v1118, %v1117
    %v1167 = vpack.c.bf16 %v1120, %v1119
    %v1168 = vpack.c.bf16 %v1122, %v1121
    %v1169 = vpack.c.bf16 %v1124, %v1123
    %v1170 = vpack.c.bf16 %v1126, %v1125
    %v1171 = vpack.c.bf16 %v1128, %v1127
    %v1172 = vpack.c.bf16 %v1130, %v1129
    %v1173 = vpack.c.bf16 %v1132, %v1131
    %v1174 = vpack.c.bf16 %v1134, %v1133
    %v1175 = vpack.c.bf16 %v1136, %v1135
    %v1176 = vpack.c.bf16 %v1138, %v1137
    %v1177 = vpack.c.bf16 %v1140, %v1139
    %v1178 = vpack.c.bf16 %v1142, %v1141
    %v1179 = vpack.c.bf16 %v1144, %v1143
    %v1180 = vpack.c.bf16 %v1146, %v1145
    %v1181 = vpack.c.bf16 %v1148, %v1147
    %v1182 = vpack.c.bf16 %v1150, %v1149
    %v1183 = vld [vmem:[%s2 + $0x48] sm:$0xf]
    %v1184 = vld [vmem:[%s2 + $0x4c] sm:$0xf]
    %v1185 = vld [vmem:[%s2 + $0x50] sm:$0xf]
    %v1186 = vld [vmem:[%s2 + $0x54] sm:$0xf]
    %v1187 = vld [vmem:[%s2 + $0x58] sm:$0xf]
    %v1188 = vld [vmem:[%s2 + $0x5c] sm:$0xf]
    %v1189 = vld [vmem:[%s2 + $0x60] sm:$0xf]
    %v1190 = vld [vmem:[%s2 + $0x64] sm:$0xf]
    %v1191 = vld [vmem:[%s2 + $0x68] sm:$0xf]
    %v1192 = vld [vmem:[%s2 + $0x6c] sm:$0xf]
    %v1193 = vld [vmem:[%s2 + $0x70] sm:$0xf]
    %v1194 = vld [vmem:[%s2 + $0x74] sm:$0xf]
    %v1195 = vld [vmem:[%s2 + $0x78] sm:$0xf]
    %v1196 = vld [vmem:[%s2 + $0x7c] sm:$0xf]
    %v1197 = vld [vmem:[%s2 + $0x80] sm:$0xf]
    %v1198 = vld [vmem:[%s2 + $0x84] sm:$0xf]
    %v1199 = vld [vmem:[%s1] sm:$0xff]
    %v1200 = vld [vmem:[%s1 + $0x8] sm:$0xff]
    %v1201 = vld [vmem:[%s1 + $0x10] sm:$0xff]
    %v1202 = vld [vmem:[%s1 + $0x18] sm:$0xff]
    %v1203 = vld [vmem:[%s1 + $0x20] sm:$0xff]
    %v1204 = vld [vmem:[%s1 + $0x28] sm:$0xff]
    %v1205 = vld [vmem:[%s1 + $0x30] sm:$0xff]
    %v1206 = vld [vmem:[%s1 + $0x38] sm:$0xff]
    %v1207 = vld [vmem:[%s1 + $0x40] sm:$0xff]
    %v1208 = vld [vmem:[%s1 + $0x48] sm:$0xff]
    %v1209 = vld [vmem:[%s1 + $0x50] sm:$0xff]
    %v1210 = vld [vmem:[%s1 + $0x58] sm:$0xff]
    %v1211 = vld [vmem:[%s1 + $0x60] sm:$0xff]
    %v1212 = vld [vmem:[%s1 + $0x68] sm:$0xff]
    %v1213 = vld [vmem:[%s1 + $0x70] sm:$0xff]
    %v1214 = vld [vmem:[%s1 + $0x78] sm:$0xff]
    %v1215 = vld [vmem:[%s1 + $0x80] sm:$0xff]
    %v1216 = vld [vmem:[%s1 + $0x88] sm:$0xff]
    %v1217 = vld [vmem:[%s1 + $0x90] sm:$0xff]
    %v1218 = vld [vmem:[%s1 + $0x98] sm:$0xff]
    %v1219 = vld [vmem:[%s1 + $0xa0] sm:$0xff]
    %v1220 = vld [vmem:[%s1 + $0xa8] sm:$0xff]
    %v1221 = vld [vmem:[%s1 + $0xb0] sm:$0xff]
    %v1222 = vld [vmem:[%s1 + $0xb8] sm:$0xff]
    %v1223 = vld [vmem:[%s1 + $0xc0] sm:$0xff]
    %v1224 = vld [vmem:[%s1 + $0xc8] sm:$0xff]
    %v1225 = vld [vmem:[%s1 + $0xd0] sm:$0xff]
    %v1226 = vld [vmem:[%s1 + $0xd8] sm:$0xff]
    %v1227 = vld [vmem:[%s1 + $0xe0] sm:$0xff]
    %v1228 = vld [vmem:[%s1 + $0xe8] sm:$0xff]
    %v1229 = vld [vmem:[%s1 + $0xf0] sm:$0xff]
    %v1230 = vld [vmem:[%s1 + $0xf8] sm:$0xff]
    %v1231 = vld [vmem:[%s1 + $0x100] sm:$0xff]
    %v1232 = vld [vmem:[%s1 + $0x108] sm:$0xff]
    %v1233 = vld [vmem:[%s1 + $0x110] sm:$0xff]
    %v1234 = vld [vmem:[%s1 + $0x118] sm:$0xff]
    %v1235 = vld [vmem:[%s1 + $0x120] sm:$0xff]
    %v1236 = vld [vmem:[%s1 + $0x128] sm:$0xff]
    %v1237 = vld [vmem:[%s1 + $0x130] sm:$0xff]
    %v1238 = vld [vmem:[%s1 + $0x138] sm:$0xff]
    %v1239 = vld [vmem:[%s1 + $0x140] sm:$0xff]
    %v1240 = vld [vmem:[%s1 + $0x148] sm:$0xff]
    %v1241 = vld [vmem:[%s1 + $0x150] sm:$0xff]
    %v1242 = vld [vmem:[%s1 + $0x158] sm:$0xff]
    %v1243 = vld [vmem:[%s1 + $0x160] sm:$0xff]
    %v1244 = vld [vmem:[%s1 + $0x168] sm:$0xff]
    %v1245 = vld [vmem:[%s1 + $0x170] sm:$0xff]
    %v1246 = vld [vmem:[%s1 + $0x178] sm:$0xff]
    %v1247 = vld [vmem:[%s1 + $0x180] sm:$0xff]
    %v1248 = vld [vmem:[%s1 + $0x188] sm:$0xff]
    %v1249 = vld [vmem:[%s1 + $0x190] sm:$0xff]
    %v1250 = vld [vmem:[%s1 + $0x198] sm:$0xff]
    %v1251 = vld [vmem:[%s1 + $0x1a0] sm:$0xff]
    %v1252 = vld [vmem:[%s1 + $0x1a8] sm:$0xff]
    %v1253 = vld [vmem:[%s1 + $0x1b0] sm:$0xff]
    %v1254 = vld [vmem:[%s1 + $0x1b8] sm:$0xff]
    %v1255 = vld [vmem:[%s1 + $0x1c0] sm:$0xff]
    %v1256 = vld [vmem:[%s1 + $0x1c8] sm:$0xff]
    %v1257 = vld [vmem:[%s1 + $0x1d0] sm:$0xff]
    %v1258 = vld [vmem:[%s1 + $0x1d8] sm:$0xff]
    %v1259 = vld [vmem:[%s1 + $0x1e0] sm:$0xff]
    %v1260 = vld [vmem:[%s1 + $0x1e8] sm:$0xff]
    %v1261 = vld [vmem:[%s1 + $0x1f0] sm:$0xff]
    %v1262 = vld [vmem:[%s1 + $0x1f8] sm:$0xff]
    %1264 = vset.pattern.permute.xlu0 0
    %1265 = vperm.xlu0 %1264, %v1199
    %v1266 = vpop.permute.xlu0 %1265
    %1269 = vset.pattern.permute.xlu0 0
    %1270 = vperm.xlu0 %1269, %v1200
    %v1271 = vpop.permute.xlu0 %1270
    %1274 = vset.pattern.permute.xlu0 0
    %1275 = vperm.xlu0 %1274, %v1201
    %v1276 = vpop.permute.xlu0 %1275
    %1279 = vset.pattern.permute.xlu0 0
    %1280 = vperm.xlu0 %1279, %v1202
    %v1281 = vpop.permute.xlu0 %1280
    %1284 = vset.pattern.permute.xlu0 0
    %1285 = vperm.xlu0 %1284, %v1203
    %v1286 = vpop.permute.xlu0 %1285
    %1289 = vset.pattern.permute.xlu0 0
    %1290 = vperm.xlu0 %1289, %v1204
    %v1291 = vpop.permute.xlu0 %1290
    %1294 = vset.pattern.permute.xlu0 0
    %1295 = vperm.xlu0 %1294, %v1205
    %v1296 = vpop.permute.xlu0 %1295
    %1299 = vset.pattern.permute.xlu0 0
    %1300 = vperm.xlu0 %1299, %v1206
    %v1301 = vpop.permute.xlu0 %1300
    %1304 = vset.pattern.permute.xlu0 0
    %1305 = vperm.xlu0 %1304, %v1207
    %v1306 = vpop.permute.xlu0 %1305
    %1309 = vset.pattern.permute.xlu0 0
    %1310 = vperm.xlu0 %1309, %v1208
    %v1311 = vpop.permute.xlu0 %1310
    %1314 = vset.pattern.permute.xlu0 0
    %1315 = vperm.xlu0 %1314, %v1209
    %v1316 = vpop.permute.xlu0 %1315
    %1319 = vset.pattern.permute.xlu0 0
    %1320 = vperm.xlu0 %1319, %v1210
    %v1321 = vpop.permute.xlu0 %1320
    %1324 = vset.pattern.permute.xlu0 0
    %1325 = vperm.xlu0 %1324, %v1211
    %v1326 = vpop.permute.xlu0 %1325
    %1329 = vset.pattern.permute.xlu0 0
    %1330 = vperm.xlu0 %1329, %v1212
    %v1331 = vpop.permute.xlu0 %1330
    %1334 = vset.pattern.permute.xlu0 0
    %1335 = vperm.xlu0 %1334, %v1213
    %v1336 = vpop.permute.xlu0 %1335
    %1339 = vset.pattern.permute.xlu0 0
    %1340 = vperm.xlu0 %1339, %v1214
    %v1341 = vpop.permute.xlu0 %1340
    %1344 = vset.pattern.permute.xlu0 0
    %1345 = vperm.xlu0 %1344, %v1215
    %v1346 = vpop.permute.xlu0 %1345
    %1349 = vset.pattern.permute.xlu0 0
    %1350 = vperm.xlu0 %1349, %v1216
    %v1351 = vpop.permute.xlu0 %1350
    %1354 = vset.pattern.permute.xlu0 0
    %1355 = vperm.xlu0 %1354, %v1217
    %v1356 = vpop.permute.xlu0 %1355
    %1359 = vset.pattern.permute.xlu0 0
    %1360 = vperm.xlu0 %1359, %v1218
    %v1361 = vpop.permute.xlu0 %1360
    %1364 = vset.pattern.permute.xlu0 0
    %1365 = vperm.xlu0 %1364, %v1219
    %v1366 = vpop.permute.xlu0 %1365
    %1369 = vset.pattern.permute.xlu0 0
    %1370 = vperm.xlu0 %1369, %v1220
    %v1371 = vpop.permute.xlu0 %1370
    %1374 = vset.pattern.permute.xlu0 0
    %1375 = vperm.xlu0 %1374, %v1221
    %v1376 = vpop.permute.xlu0 %1375
    %1379 = vset.pattern.permute.xlu0 0
    %1380 = vperm.xlu0 %1379, %v1222
    %v1381 = vpop.permute.xlu0 %1380
    %1384 = vset.pattern.permute.xlu0 0
    %1385 = vperm.xlu0 %1384, %v1223
    %v1386 = vpop.permute.xlu0 %1385
    %1389 = vset.pattern.permute.xlu0 0
    %1390 = vperm.xlu0 %1389, %v1224
    %v1391 = vpop.permute.xlu0 %1390
    %1394 = vset.pattern.permute.xlu0 0
    %1395 = vperm.xlu0 %1394, %v1225
    %v1396 = vpop.permute.xlu0 %1395
    %1399 = vset.pattern.permute.xlu0 0
    %1400 = vperm.xlu0 %1399, %v1226
    %v1401 = vpop.permute.xlu0 %1400
    %1404 = vset.pattern.permute.xlu0 0
    %1405 = vperm.xlu0 %1404, %v1227
    %v1406 = vpop.permute.xlu0 %1405
    %1409 = vset.pattern.permute.xlu0 0
    %1410 = vperm.xlu0 %1409, %v1228
    %v1411 = vpop.permute.xlu0 %1410
    %1414 = vset.pattern.permute.xlu0 0
    %1415 = vperm.xlu0 %1414, %v1229
    %v1416 = vpop.permute.xlu0 %1415
    %1419 = vset.pattern.permute.xlu0 0
    %1420 = vperm.xlu0 %1419, %v1230
    %v1421 = vpop.permute.xlu0 %1420
    %1424 = vset.pattern.permute.xlu0 0
    %1425 = vperm.xlu0 %1424, %v1231
    %v1426 = vpop.permute.xlu0 %1425
    %1429 = vset.pattern.permute.xlu0 0
    %1430 = vperm.xlu0 %1429, %v1232
    %v1431 = vpop.permute.xlu0 %1430
    %1434 = vset.pattern.permute.xlu0 0
    %1435 = vperm.xlu0 %1434, %v1233
    %v1436 = vpop.permute.xlu0 %1435
    %1439 = vset.pattern.permute.xlu0 0
    %1440 = vperm.xlu0 %1439, %v1234
    %v1441 = vpop.permute.xlu0 %1440
    %1444 = vset.pattern.permute.xlu0 0
    %1445 = vperm.xlu0 %1444, %v1235
    %v1446 = vpop.permute.xlu0 %1445
    %1449 = vset.pattern.permute.xlu0 0
    %1450 = vperm.xlu0 %1449, %v1236
    %v1451 = vpop.permute.xlu0 %1450
    %1454 = vset.pattern.permute.xlu0 0
    %1455 = vperm.xlu0 %1454, %v1237
    %v1456 = vpop.permute.xlu0 %1455
    %1459 = vset.pattern.permute.xlu0 0
    %1460 = vperm.xlu0 %1459, %v1238
    %v1461 = vpop.permute.xlu0 %1460
    %1464 = vset.pattern.permute.xlu0 0
    %1465 = vperm.xlu0 %1464, %v1239
    %v1466 = vpop.permute.xlu0 %1465
    %1469 = vset.pattern.permute.xlu0 0
    %1470 = vperm.xlu0 %1469, %v1240
    %v1471 = vpop.permute.xlu0 %1470
    %1474 = vset.pattern.permute.xlu0 0
    %1475 = vperm.xlu0 %1474, %v1241
    %v1476 = vpop.permute.xlu0 %1475
    %1479 = vset.pattern.permute.xlu0 0
    %1480 = vperm.xlu0 %1479, %v1242
    %v1481 = vpop.permute.xlu0 %1480
    %1484 = vset.pattern.permute.xlu0 0
    %1485 = vperm.xlu0 %1484, %v1243
    %v1486 = vpop.permute.xlu0 %1485
    %1489 = vset.pattern.permute.xlu0 0
    %1490 = vperm.xlu0 %1489, %v1244
    %v1491 = vpop.permute.xlu0 %1490
    %1494 = vset.pattern.permute.xlu0 0
    %1495 = vperm.xlu0 %1494, %v1245
    %v1496 = vpop.permute.xlu0 %1495
    %1499 = vset.pattern.permute.xlu0 0
    %1500 = vperm.xlu0 %1499, %v1246
    %v1501 = vpop.permute.xlu0 %1500
    %1504 = vset.pattern.permute.xlu0 0
    %1505 = vperm.xlu0 %1504, %v1247
    %v1506 = vpop.permute.xlu0 %1505
    %1509 = vset.pattern.permute.xlu0 0
    %1510 = vperm.xlu0 %1509, %v1248
    %v1511 = vpop.permute.xlu0 %1510
    %1514 = vset.pattern.permute.xlu0 0
    %1515 = vperm.xlu0 %1514, %v1249
    %v1516 = vpop.permute.xlu0 %1515
    %1519 = vset.pattern.permute.xlu0 0
    %1520 = vperm.xlu0 %1519, %v1250
    %v1521 = vpop.permute.xlu0 %1520
    %1524 = vset.pattern.permute.xlu0 0
    %1525 = vperm.xlu0 %1524, %v1251
    %v1526 = vpop.permute.xlu0 %1525
    %1529 = vset.pattern.permute.xlu0 0
    %1530 = vperm.xlu0 %1529, %v1252
    %v1531 = vpop.permute.xlu0 %1530
    %1534 = vset.pattern.permute.xlu0 0
    %1535 = vperm.xlu0 %1534, %v1253
    %v1536 = vpop.permute.xlu0 %1535
    %1539 = vset.pattern.permute.xlu0 0
    %1540 = vperm.xlu0 %1539, %v1254
    %v1541 = vpop.permute.xlu0 %1540
    %1544 = vset.pattern.permute.xlu0 0
    %1545 = vperm.xlu0 %1544, %v1255
    %v1546 = vpop.permute.xlu0 %1545
    %1549 = vset.pattern.permute.xlu0 0
    %1550 = vperm.xlu0 %1549, %v1256
    %v1551 = vpop.permute.xlu0 %1550
    %1554 = vset.pattern.permute.xlu0 0
    %1555 = vperm.xlu0 %1554, %v1257
    %v1556 = vpop.permute.xlu0 %1555
    %1559 = vset.pattern.permute.xlu0 0
    %1560 = vperm.xlu0 %1559, %v1258
    %v1561 = vpop.permute.xlu0 %1560
    %1564 = vset.pattern.permute.xlu0 0
    %1565 = vperm.xlu0 %1564, %v1259
    %v1566 = vpop.permute.xlu0 %1565
    %1569 = vset.pattern.permute.xlu0 0
    %1570 = vperm.xlu0 %1569, %v1260
    %v1571 = vpop.permute.xlu0 %1570
    %1574 = vset.pattern.permute.xlu0 0
    %1575 = vperm.xlu0 %1574, %v1261
    %v1576 = vpop.permute.xlu0 %1575
    %1579 = vset.pattern.permute.xlu0 0
    %1580 = vperm.xlu0 %1579, %v1262
    %v1581 = vpop.permute.xlu0 %1580
    %v1583 = vlaneseq
    %v1584 = vshrl.u32 %v1583, 7
    %v1585 = vsub.s32 1, %v1584
    %v1586 = vrot.slane %v83, %v1585
    %v1587 = vmul.f32 %v1266, %v1586
    %v1588 = vmul.f32 %v1271, %v1586
    %v1589 = vmul.f32 %v1276, %v1586
    %v1590 = vmul.f32 %v1281, %v1586
    %v1591 = vmul.f32 %v1286, %v1586
    %v1592 = vmul.f32 %v1291, %v1586
    %v1593 = vmul.f32 %v1296, %v1586
    %v1594 = vmul.f32 %v1301, %v1586
    %v1595 = vmul.f32 %v1306, %v1586
    %v1596 = vmul.f32 %v1311, %v1586
    %v1597 = vmul.f32 %v1316, %v1586
    %v1598 = vmul.f32 %v1321, %v1586
    %v1599 = vmul.f32 %v1326, %v1586
    %v1600 = vmul.f32 %v1331, %v1586
    %v1601 = vmul.f32 %v1336, %v1586
    %v1602 = vmul.f32 %v1341, %v1586
    %v1603 = vmul.f32 %v1346, %v1586
    %v1604 = vmul.f32 %v1351, %v1586
    %v1605 = vmul.f32 %v1356, %v1586
    %v1606 = vmul.f32 %v1361, %v1586
    %v1607 = vmul.f32 %v1366, %v1586
    %v1608 = vmul.f32 %v1371, %v1586
    %v1609 = vmul.f32 %v1376, %v1586
    %v1610 = vmul.f32 %v1381, %v1586
    %v1611 = vmul.f32 %v1386, %v1586
    %v1612 = vmul.f32 %v1391, %v1586
    %v1613 = vmul.f32 %v1396, %v1586
    %v1614 = vmul.f32 %v1401, %v1586
    %v1615 = vmul.f32 %v1406, %v1586
    %v1616 = vmul.f32 %v1411, %v1586
    %v1617 = vmul.f32 %v1416, %v1586
    %v1618 = vmul.f32 %v1421, %v1586
    %v1619 = vmul.f32 %v1426, %v1586
    %v1620 = vmul.f32 %v1431, %v1586
    %v1621 = vmul.f32 %v1436, %v1586
    %v1622 = vmul.f32 %v1441, %v1586
    %v1623 = vmul.f32 %v1446, %v1586
    %v1624 = vmul.f32 %v1451, %v1586
    %v1625 = vmul.f32 %v1456, %v1586
    %v1626 = vmul.f32 %v1461, %v1586
    %v1627 = vmul.f32 %v1466, %v1586
    %v1628 = vmul.f32 %v1471, %v1586
    %v1629 = vmul.f32 %v1476, %v1586
    %v1630 = vmul.f32 %v1481, %v1586
    %v1631 = vmul.f32 %v1486, %v1586
    %v1632 = vmul.f32 %v1491, %v1586
    %v1633 = vmul.f32 %v1496, %v1586
    %v1634 = vmul.f32 %v1501, %v1586
    %v1635 = vmul.f32 %v1506, %v1586
    %v1636 = vmul.f32 %v1511, %v1586
    %v1637 = vmul.f32 %v1516, %v1586
    %v1638 = vmul.f32 %v1521, %v1586
    %v1639 = vmul.f32 %v1526, %v1586
    %v1640 = vmul.f32 %v1531, %v1586
    %v1641 = vmul.f32 %v1536, %v1586
    %v1642 = vmul.f32 %v1541, %v1586
    %v1643 = vmul.f32 %v1546, %v1586
    %v1644 = vmul.f32 %v1551, %v1586
    %v1645 = vmul.f32 %v1556, %v1586
    %v1646 = vmul.f32 %v1561, %v1586
    %v1647 = vmul.f32 %v1566, %v1586
    %v1648 = vmul.f32 %v1571, %v1586
    %v1649 = vmul.f32 %v1576, %v1586
    %v1650 = vmul.f32 %v1581, %v1586
    %1651 = vset.pattern.permute.xlu0 1
    %1652 = vperm.xlu0 %1651, %v1199
    %v1653 = vpop.permute.xlu0 %1652
    %1655 = vset.pattern.permute.xlu0 1
    %1656 = vperm.xlu0 %1655, %v1200
    %v1657 = vpop.permute.xlu0 %1656
    %1659 = vset.pattern.permute.xlu0 1
    %1660 = vperm.xlu0 %1659, %v1201
    %v1661 = vpop.permute.xlu0 %1660
    %1663 = vset.pattern.permute.xlu0 1
    %1664 = vperm.xlu0 %1663, %v1202
    %v1665 = vpop.permute.xlu0 %1664
    %1667 = vset.pattern.permute.xlu0 1
    %1668 = vperm.xlu0 %1667, %v1203
    %v1669 = vpop.permute.xlu0 %1668
    %1671 = vset.pattern.permute.xlu0 1
    %1672 = vperm.xlu0 %1671, %v1204
    %v1673 = vpop.permute.xlu0 %1672
    %1675 = vset.pattern.permute.xlu0 1
    %1676 = vperm.xlu0 %1675, %v1205
    %v1677 = vpop.permute.xlu0 %1676
    %1679 = vset.pattern.permute.xlu0 1
    %1680 = vperm.xlu0 %1679, %v1206
    %v1681 = vpop.permute.xlu0 %1680
    %1683 = vset.pattern.permute.xlu0 1
    %1684 = vperm.xlu0 %1683, %v1207
    %v1685 = vpop.permute.xlu0 %1684
    %1687 = vset.pattern.permute.xlu0 1
    %1688 = vperm.xlu0 %1687, %v1208
    %v1689 = vpop.permute.xlu0 %1688
    %1691 = vset.pattern.permute.xlu0 1
    %1692 = vperm.xlu0 %1691, %v1209
    %v1693 = vpop.permute.xlu0 %1692
    %1695 = vset.pattern.permute.xlu0 1
    %1696 = vperm.xlu0 %1695, %v1210
    %v1697 = vpop.permute.xlu0 %1696
    %1699 = vset.pattern.permute.xlu0 1
    %1700 = vperm.xlu0 %1699, %v1211
    %v1701 = vpop.permute.xlu0 %1700
    %1703 = vset.pattern.permute.xlu0 1
    %1704 = vperm.xlu0 %1703, %v1212
    %v1705 = vpop.permute.xlu0 %1704
    %1707 = vset.pattern.permute.xlu0 1
    %1708 = vperm.xlu0 %1707, %v1213
    %v1709 = vpop.permute.xlu0 %1708
    %1711 = vset.pattern.permute.xlu0 1
    %1712 = vperm.xlu0 %1711, %v1214
    %v1713 = vpop.permute.xlu0 %1712
    %1715 = vset.pattern.permute.xlu0 1
    %1716 = vperm.xlu0 %1715, %v1215
    %v1717 = vpop.permute.xlu0 %1716
    %1719 = vset.pattern.permute.xlu0 1
    %1720 = vperm.xlu0 %1719, %v1216
    %v1721 = vpop.permute.xlu0 %1720
    %1723 = vset.pattern.permute.xlu0 1
    %1724 = vperm.xlu0 %1723, %v1217
    %v1725 = vpop.permute.xlu0 %1724
    %1727 = vset.pattern.permute.xlu0 1
    %1728 = vperm.xlu0 %1727, %v1218
    %v1729 = vpop.permute.xlu0 %1728
    %1731 = vset.pattern.permute.xlu0 1
    %1732 = vperm.xlu0 %1731, %v1219
    %v1733 = vpop.permute.xlu0 %1732
    %1735 = vset.pattern.permute.xlu0 1
    %1736 = vperm.xlu0 %1735, %v1220
    %v1737 = vpop.permute.xlu0 %1736
    %1739 = vset.pattern.permute.xlu0 1
    %1740 = vperm.xlu0 %1739, %v1221
    %v1741 = vpop.permute.xlu0 %1740
    %1743 = vset.pattern.permute.xlu0 1
    %1744 = vperm.xlu0 %1743, %v1222
    %v1745 = vpop.permute.xlu0 %1744
    %1747 = vset.pattern.permute.xlu0 1
    %1748 = vperm.xlu0 %1747, %v1223
    %v1749 = vpop.permute.xlu0 %1748
    %1751 = vset.pattern.permute.xlu0 1
    %1752 = vperm.xlu0 %1751, %v1224
    %v1753 = vpop.permute.xlu0 %1752
    %1755 = vset.pattern.permute.xlu0 1
    %1756 = vperm.xlu0 %1755, %v1225
    %v1757 = vpop.permute.xlu0 %1756
    %1759 = vset.pattern.permute.xlu0 1
    %1760 = vperm.xlu0 %1759, %v1226
    %v1761 = vpop.permute.xlu0 %1760
    %1763 = vset.pattern.permute.xlu0 1
    %1764 = vperm.xlu0 %1763, %v1227
    %v1765 = vpop.permute.xlu0 %1764
    %1767 = vset.pattern.permute.xlu0 1
    %1768 = vperm.xlu0 %1767, %v1228
    %v1769 = vpop.permute.xlu0 %1768
    %1771 = vset.pattern.permute.xlu0 1
    %1772 = vperm.xlu0 %1771, %v1229
    %v1773 = vpop.permute.xlu0 %1772
    %1775 = vset.pattern.permute.xlu0 1
    %1776 = vperm.xlu0 %1775, %v1230
    %v1777 = vpop.permute.xlu0 %1776
    %1779 = vset.pattern.permute.xlu0 1
    %1780 = vperm.xlu0 %1779, %v1231
    %v1781 = vpop.permute.xlu0 %1780
    %1783 = vset.pattern.permute.xlu0 1
    %1784 = vperm.xlu0 %1783, %v1232
    %v1785 = vpop.permute.xlu0 %1784
    %1787 = vset.pattern.permute.xlu0 1
    %1788 = vperm.xlu0 %1787, %v1233
    %v1789 = vpop.permute.xlu0 %1788
    %1791 = vset.pattern.permute.xlu0 1
    %1792 = vperm.xlu0 %1791, %v1234
    %v1793 = vpop.permute.xlu0 %1792
    %1795 = vset.pattern.permute.xlu0 1
    %1796 = vperm.xlu0 %1795, %v1235
    %v1797 = vpop.permute.xlu0 %1796
    %1799 = vset.pattern.permute.xlu0 1
    %1800 = vperm.xlu0 %1799, %v1236
    %v1801 = vpop.permute.xlu0 %1800
    %1803 = vset.pattern.permute.xlu0 1
    %1804 = vperm.xlu0 %1803, %v1237
    %v1805 = vpop.permute.xlu0 %1804
    %1807 = vset.pattern.permute.xlu0 1
    %1808 = vperm.xlu0 %1807, %v1238
    %v1809 = vpop.permute.xlu0 %1808
    %1811 = vset.pattern.permute.xlu0 1
    %1812 = vperm.xlu0 %1811, %v1239
    %v1813 = vpop.permute.xlu0 %1812
    %1815 = vset.pattern.permute.xlu0 1
    %1816 = vperm.xlu0 %1815, %v1240
    %v1817 = vpop.permute.xlu0 %1816
    %1819 = vset.pattern.permute.xlu0 1
    %1820 = vperm.xlu0 %1819, %v1241
    %v1821 = vpop.permute.xlu0 %1820
    %1823 = vset.pattern.permute.xlu0 1
    %1824 = vperm.xlu0 %1823, %v1242
    %v1825 = vpop.permute.xlu0 %1824
    %1827 = vset.pattern.permute.xlu0 1
    %1828 = vperm.xlu0 %1827, %v1243
    %v1829 = vpop.permute.xlu0 %1828
    %1831 = vset.pattern.permute.xlu0 1
    %1832 = vperm.xlu0 %1831, %v1244
    %v1833 = vpop.permute.xlu0 %1832
    %1835 = vset.pattern.permute.xlu0 1
    %1836 = vperm.xlu0 %1835, %v1245
    %v1837 = vpop.permute.xlu0 %1836
    %1839 = vset.pattern.permute.xlu0 1
    %1840 = vperm.xlu0 %1839, %v1246
    %v1841 = vpop.permute.xlu0 %1840
    %1843 = vset.pattern.permute.xlu0 1
    %1844 = vperm.xlu0 %1843, %v1247
    %v1845 = vpop.permute.xlu0 %1844
    %1847 = vset.pattern.permute.xlu0 1
    %1848 = vperm.xlu0 %1847, %v1248
    %v1849 = vpop.permute.xlu0 %1848
    %1851 = vset.pattern.permute.xlu0 1
    %1852 = vperm.xlu0 %1851, %v1249
    %v1853 = vpop.permute.xlu0 %1852
    %1855 = vset.pattern.permute.xlu0 1
    %1856 = vperm.xlu0 %1855, %v1250
    %v1857 = vpop.permute.xlu0 %1856
    %1859 = vset.pattern.permute.xlu0 1
    %1860 = vperm.xlu0 %1859, %v1251
    %v1861 = vpop.permute.xlu0 %1860
    %1863 = vset.pattern.permute.xlu0 1
    %1864 = vperm.xlu0 %1863, %v1252
    %v1865 = vpop.permute.xlu0 %1864
    %1867 = vset.pattern.permute.xlu0 1
    %1868 = vperm.xlu0 %1867, %v1253
    %v1869 = vpop.permute.xlu0 %1868
    %1871 = vset.pattern.permute.xlu0 1
    %1872 = vperm.xlu0 %1871, %v1254
    %v1873 = vpop.permute.xlu0 %1872
    %1875 = vset.pattern.permute.xlu0 1
    %1876 = vperm.xlu0 %1875, %v1255
    %v1877 = vpop.permute.xlu0 %1876
    %1879 = vset.pattern.permute.xlu0 1
    %1880 = vperm.xlu0 %1879, %v1256
    %v1881 = vpop.permute.xlu0 %1880
    %1883 = vset.pattern.permute.xlu0 1
    %1884 = vperm.xlu0 %1883, %v1257
    %v1885 = vpop.permute.xlu0 %1884
    %1887 = vset.pattern.permute.xlu0 1
    %1888 = vperm.xlu0 %1887, %v1258
    %v1889 = vpop.permute.xlu0 %1888
    %1891 = vset.pattern.permute.xlu0 1
    %1892 = vperm.xlu0 %1891, %v1259
    %v1893 = vpop.permute.xlu0 %1892
    %1895 = vset.pattern.permute.xlu0 1
    %1896 = vperm.xlu0 %1895, %v1260
    %v1897 = vpop.permute.xlu0 %1896
    %1899 = vset.pattern.permute.xlu0 1
    %1900 = vperm.xlu0 %1899, %v1261
    %v1901 = vpop.permute.xlu0 %1900
    %1903 = vset.pattern.permute.xlu0 1
    %1904 = vperm.xlu0 %1903, %v1262
    %v1905 = vpop.permute.xlu0 %1904
    %v1907 = vlaneseq
    %v1908 = vshrl.u32 %v1907, 7
    %v1909 = vsub.s32 2, %v1908
    %v1910 = vrot.slane %v83, %v1909
    %v1911 = vmul.f32 %v1653, %v1910
    %v1912 = vmul.f32 %v1657, %v1910
    %v1913 = vmul.f32 %v1661, %v1910
    %v1914 = vmul.f32 %v1665, %v1910
    %v1915 = vmul.f32 %v1669, %v1910
    %v1916 = vmul.f32 %v1673, %v1910
    %v1917 = vmul.f32 %v1677, %v1910
    %v1918 = vmul.f32 %v1681, %v1910
    %v1919 = vmul.f32 %v1685, %v1910
    %v1920 = vmul.f32 %v1689, %v1910
    %v1921 = vmul.f32 %v1693, %v1910
    %v1922 = vmul.f32 %v1697, %v1910
    %v1923 = vmul.f32 %v1701, %v1910
    %v1924 = vmul.f32 %v1705, %v1910
    %v1925 = vmul.f32 %v1709, %v1910
    %v1926 = vmul.f32 %v1713, %v1910
    %v1927 = vmul.f32 %v1717, %v1910
    %v1928 = vmul.f32 %v1721, %v1910
    %v1929 = vmul.f32 %v1725, %v1910
    %v1930 = vmul.f32 %v1729, %v1910
    %v1931 = vmul.f32 %v1733, %v1910
    %v1932 = vmul.f32 %v1737, %v1910
    %v1933 = vmul.f32 %v1741, %v1910
    %v1934 = vmul.f32 %v1745, %v1910
    %v1935 = vmul.f32 %v1749, %v1910
    %v1936 = vmul.f32 %v1753, %v1910
    %v1937 = vmul.f32 %v1757, %v1910
    %v1938 = vmul.f32 %v1761, %v1910
    %v1939 = vmul.f32 %v1765, %v1910
    %v1940 = vmul.f32 %v1769, %v1910
    %v1941 = vmul.f32 %v1773, %v1910
    %v1942 = vmul.f32 %v1777, %v1910
    %v1943 = vmul.f32 %v1781, %v1910
    %v1944 = vmul.f32 %v1785, %v1910
    %v1945 = vmul.f32 %v1789, %v1910
    %v1946 = vmul.f32 %v1793, %v1910
    %v1947 = vmul.f32 %v1797, %v1910
    %v1948 = vmul.f32 %v1801, %v1910
    %v1949 = vmul.f32 %v1805, %v1910
    %v1950 = vmul.f32 %v1809, %v1910
    %v1951 = vmul.f32 %v1813, %v1910
    %v1952 = vmul.f32 %v1817, %v1910
    %v1953 = vmul.f32 %v1821, %v1910
    %v1954 = vmul.f32 %v1825, %v1910
    %v1955 = vmul.f32 %v1829, %v1910
    %v1956 = vmul.f32 %v1833, %v1910
    %v1957 = vmul.f32 %v1837, %v1910
    %v1958 = vmul.f32 %v1841, %v1910
    %v1959 = vmul.f32 %v1845, %v1910
    %v1960 = vmul.f32 %v1849, %v1910
    %v1961 = vmul.f32 %v1853, %v1910
    %v1962 = vmul.f32 %v1857, %v1910
    %v1963 = vmul.f32 %v1861, %v1910
    %v1964 = vmul.f32 %v1865, %v1910
    %v1965 = vmul.f32 %v1869, %v1910
    %v1966 = vmul.f32 %v1873, %v1910
    %v1967 = vmul.f32 %v1877, %v1910
    %v1968 = vmul.f32 %v1881, %v1910
    %v1969 = vmul.f32 %v1885, %v1910
    %v1970 = vmul.f32 %v1889, %v1910
    %v1971 = vmul.f32 %v1893, %v1910
    %v1972 = vmul.f32 %v1897, %v1910
    %v1973 = vmul.f32 %v1901, %v1910
    %v1974 = vmul.f32 %v1905, %v1910
    %v1975 = vadd.f32 %v1587, %v1911
    %v1976 = vadd.f32 %v1588, %v1912
    %v1977 = vadd.f32 %v1589, %v1913
    %v1978 = vadd.f32 %v1590, %v1914
    %v1979 = vadd.f32 %v1591, %v1915
    %v1980 = vadd.f32 %v1592, %v1916
    %v1981 = vadd.f32 %v1593, %v1917
    %v1982 = vadd.f32 %v1594, %v1918
    %v1983 = vadd.f32 %v1595, %v1919
    %v1984 = vadd.f32 %v1596, %v1920
    %v1985 = vadd.f32 %v1597, %v1921
    %v1986 = vadd.f32 %v1598, %v1922
    %v1987 = vadd.f32 %v1599, %v1923
    %v1988 = vadd.f32 %v1600, %v1924
    %v1989 = vadd.f32 %v1601, %v1925
    %v1990 = vadd.f32 %v1602, %v1926
    %v1991 = vadd.f32 %v1603, %v1927
    %v1992 = vadd.f32 %v1604, %v1928
    %v1993 = vadd.f32 %v1605, %v1929
    %v1994 = vadd.f32 %v1606, %v1930
    %v1995 = vadd.f32 %v1607, %v1931
    %v1996 = vadd.f32 %v1608, %v1932
    %v1997 = vadd.f32 %v1609, %v1933
    %v1998 = vadd.f32 %v1610, %v1934
    %v1999 = vadd.f32 %v1611, %v1935
    %v2000 = vadd.f32 %v1612, %v1936
    %v2001 = vadd.f32 %v1613, %v1937
    %v2002 = vadd.f32 %v1614, %v1938
    %v2003 = vadd.f32 %v1615, %v1939
    %v2004 = vadd.f32 %v1616, %v1940
    %v2005 = vadd.f32 %v1617, %v1941
    %v2006 = vadd.f32 %v1618, %v1942
    %v2007 = vadd.f32 %v1619, %v1943
    %v2008 = vadd.f32 %v1620, %v1944
    %v2009 = vadd.f32 %v1621, %v1945
    %v2010 = vadd.f32 %v1622, %v1946
    %v2011 = vadd.f32 %v1623, %v1947
    %v2012 = vadd.f32 %v1624, %v1948
    %v2013 = vadd.f32 %v1625, %v1949
    %v2014 = vadd.f32 %v1626, %v1950
    %v2015 = vadd.f32 %v1627, %v1951
    %v2016 = vadd.f32 %v1628, %v1952
    %v2017 = vadd.f32 %v1629, %v1953
    %v2018 = vadd.f32 %v1630, %v1954
    %v2019 = vadd.f32 %v1631, %v1955
    %v2020 = vadd.f32 %v1632, %v1956
    %v2021 = vadd.f32 %v1633, %v1957
    %v2022 = vadd.f32 %v1634, %v1958
    %v2023 = vadd.f32 %v1635, %v1959
    %v2024 = vadd.f32 %v1636, %v1960
    %v2025 = vadd.f32 %v1637, %v1961
    %v2026 = vadd.f32 %v1638, %v1962
    %v2027 = vadd.f32 %v1639, %v1963
    %v2028 = vadd.f32 %v1640, %v1964
    %v2029 = vadd.f32 %v1641, %v1965
    %v2030 = vadd.f32 %v1642, %v1966
    %v2031 = vadd.f32 %v1643, %v1967
    %v2032 = vadd.f32 %v1644, %v1968
    %v2033 = vadd.f32 %v1645, %v1969
    %v2034 = vadd.f32 %v1646, %v1970
    %v2035 = vadd.f32 %v1647, %v1971
    %v2036 = vadd.f32 %v1648, %v1972
    %v2037 = vadd.f32 %v1649, %v1973
    %v2038 = vadd.f32 %v1650, %v1974
    %v2055 = vunpack.c.l.b16 %v1183
    %v2056 = vunpack.c.l.b16 %v1184
    %v2057 = vunpack.c.l.b16 %v1185
    %v2058 = vunpack.c.l.b16 %v1186
    %v2059 = vunpack.c.l.b16 %v1187
    %v2060 = vunpack.c.l.b16 %v1188
    %v2061 = vunpack.c.l.b16 %v1189
    %v2062 = vunpack.c.l.b16 %v1190
    %v2063 = vunpack.c.l.b16 %v1191
    %v2064 = vunpack.c.l.b16 %v1192
    %v2065 = vunpack.c.l.b16 %v1193
    %v2066 = vunpack.c.l.b16 %v1194
    %v2067 = vunpack.c.l.b16 %v1195
    %v2068 = vunpack.c.l.b16 %v1196
    %v2069 = vunpack.c.l.b16 %v1197
    %v2070 = vunpack.c.l.b16 %v1198
    %v2071 = vpack.c.b16 %v2056, %v2055
    %v2072 = vpack.c.b16 %v2058, %v2057
    %v2073 = vpack.c.b16 %v2060, %v2059
    %v2074 = vpack.c.b16 %v2062, %v2061
    %v2075 = vpack.c.b16 %v2064, %v2063
    %v2076 = vpack.c.b16 %v2066, %v2065
    %v2077 = vpack.c.b16 %v2068, %v2067
    %v2078 = vpack.c.b16 %v2070, %v2069
    %2087 = vmatprep.subr.bf16.mxu0 0
    %2088 = vmatpush1.bf16.msra.mxu0 %v2071
    %2089 = vmatprep.subr.bf16.mxu0 0
    %2090 = vmatpush1.bf16.msra.mxu0 %v2072
    %2091 = vmatprep.subr.bf16.mxu0 0
    %2092 = vmatpush1.bf16.msra.mxu0 %v2073
    %2093 = vmatprep.subr.bf16.mxu0 0
    %2094 = vmatpush1.bf16.msra.mxu0 %v2074
    %2095 = vmatprep.subr.bf16.mxu0 0
    %2096 = vmatpush1.bf16.msra.mxu0 %v2075
    %2097 = vmatprep.subr.bf16.mxu0 0
    %2098 = vmatpush1.bf16.msra.mxu0 %v2076
    %2099 = vmatprep.subr.bf16.mxu0 0
    %2100 = vmatpush1.bf16.msra.mxu0 %v2077
    %2101 = vmatprep.subr.bf16.mxu0 0
    %2102 = vmatpush1.bf16.msra.mxu0 %v2078
    %2103 = vmatprep.subr.bf16.mxu0 0
    %2104 = vmatpush1.bf16.msra.mxu0 0
    %2105 = vmatprep.subr.bf16.mxu0 0
    %2106 = vmatpush1.bf16.msra.mxu0 0
    %2107 = vmatprep.subr.bf16.mxu0 0
    %2108 = vmatpush1.bf16.msra.mxu0 0
    %2109 = vmatprep.subr.bf16.mxu0 0
    %2110 = vmatpush1.bf16.msra.mxu0 0
    %2111 = vmatprep.subr.bf16.mxu0 0
    %2112 = vmatpush1.bf16.msra.mxu0 0
    %2113 = vmatprep.subr.bf16.mxu0 0
    %2114 = vmatpush1.bf16.msra.mxu0 0
    %2115 = vmatprep.subr.bf16.mxu0 0
    %2116 = vmatpush1.bf16.msra.mxu0 0
    %2117 = vmatprep.subr.bf16.mxu0 0
    %2118 = vmatpush1.bf16.msra.mxu0 0
    %2119 = vmatprep.mubr.bf16.mxu0 0
    %2120 = vmatmul.mubr.bf16.gmra.mrb[0].mxu0 %v1151
    %v2121 = vpop.f32.mrb[0].mxu0
    %v2122 = vadd.f32 %v1975, %v2121
    %v2123 = vpop.f32.mrb[0].mxu0
    %v2124 = vpop.f32.mrb[0].mxu0
    %v2125 = vadd.f32 %v1976, %v2124
    %v2126 = vpop.f32.mrb[0].mxu0
    %2127 = vmatprep.mubr.bf16.mxu0 0
    %2128 = vmatmul.mubr.bf16.gmra.mrb[0].mxu0 %v1152
    %v2129 = vpop.f32.mrb[0].mxu0
    %v2130 = vadd.f32 %v1977, %v2129
    %v2131 = vpop.f32.mrb[0].mxu0
    %v2132 = vpop.f32.mrb[0].mxu0
    %v2133 = vadd.f32 %v1978, %v2132
    %v2134 = vpop.f32.mrb[0].mxu0
    %2135 = vmatprep.mubr.bf16.mxu0 0
    %2136 = vmatmul.mubr.bf16.gmra.mrb[0].mxu0 %v1153
    %v2137 = vpop.f32.mrb[0].mxu0
    %v2138 = vadd.f32 %v1979, %v2137
    %v2139 = vpop.f32.mrb[0].mxu0
    %v2140 = vpop.f32.mrb[0].mxu0
    %v2141 = vadd.f32 %v1980, %v2140
    %v2142 = vpop.f32.mrb[0].mxu0
    %2143 = vmatprep.mubr.bf16.mxu0 0
    %2144 = vmatmul.mubr.bf16.gmra.mrb[0].mxu0 %v1154
    %v2145 = vpop.f32.mrb[0].mxu0
    %v2146 = vadd.f32 %v1981, %v2145
    %v2147 = vpop.f32.mrb[0].mxu0
    %v2148 = vpop.f32.mrb[0].mxu0
    %v2149 = vadd.f32 %v1982, %v2148
    %v2150 = vpop.f32.mrb[0].mxu0
    %2151 = vmatprep.mubr.bf16.mxu0 0
    %2152 = vmatmul.mubr.bf16.gmra.mrb[0].mxu0 %v1155
    %v2153 = vpop.f32.mrb[0].mxu0
    %v2154 = vadd.f32 %v1983, %v2153
    %v2155 = vpop.f32.mrb[0].mxu0
    %v2156 = vpop.f32.mrb[0].mxu0
    %v2157 = vadd.f32 %v1984, %v2156
    %v2158 = vpop.f32.mrb[0].mxu0
    %2159 = vmatprep.mubr.bf16.mxu0 0
    %2160 = vmatmul.mubr.bf16.gmra.mrb[0].mxu0 %v1156
    %v2161 = vpop.f32.mrb[0].mxu0
    %v2162 = vadd.f32 %v1985, %v2161
    %v2163 = vpop.f32.mrb[0].mxu0
    %v2164 = vpop.f32.mrb[0].mxu0
    %v2165 = vadd.f32 %v1986, %v2164
    %v2166 = vpop.f32.mrb[0].mxu0
    %2167 = vmatprep.mubr.bf16.mxu0 0
    %2168 = vmatmul.mubr.bf16.gmra.mrb[0].mxu0 %v1157
    %v2169 = vpop.f32.mrb[0].mxu0
    %v2170 = vadd.f32 %v1987, %v2169
    %v2171 = vpop.f32.mrb[0].mxu0
    %v2172 = vpop.f32.mrb[0].mxu0
    %v2173 = vadd.f32 %v1988, %v2172
    %v2174 = vpop.f32.mrb[0].mxu0
    %2175 = vmatprep.mubr.bf16.mxu0 0
    %2176 = vmatmul.mubr.bf16.gmra.mrb[0].mxu0 %v1158
    %v2177 = vpop.f32.mrb[0].mxu0
    %v2178 = vadd.f32 %v1989, %v2177
    %v2179 = vpop.f32.mrb[0].mxu0
    %v2180 = vpop.f32.mrb[0].mxu0
    %v2181 = vadd.f32 %v1990, %v2180
    %v2182 = vpop.f32.mrb[0].mxu0
    %2183 = vmatprep.mubr.bf16.mxu0 0
    %2184 = vmatmul.mubr.bf16.gmra.mrb[0].mxu0 %v1159
    %v2185 = vpop.f32.mrb[0].mxu0
    %v2186 = vadd.f32 %v1991, %v2185
    %v2187 = vpop.f32.mrb[0].mxu0
    %v2188 = vpop.f32.mrb[0].mxu0
    %v2189 = vadd.f32 %v1992, %v2188
    %v2190 = vpop.f32.mrb[0].mxu0
    %2191 = vmatprep.mubr.bf16.mxu0 0
    %2192 = vmatmul.mubr.bf16.gmra.mrb[0].mxu0 %v1160
    %v2193 = vpop.f32.mrb[0].mxu0
    %v2194 = vadd.f32 %v1993, %v2193
    %v2195 = vpop.f32.mrb[0].mxu0
    %v2196 = vpop.f32.mrb[0].mxu0
    %v2197 = vadd.f32 %v1994, %v2196
    %v2198 = vpop.f32.mrb[0].mxu0
    %2199 = vmatprep.mubr.bf16.mxu0 0
    %2200 = vmatmul.mubr.bf16.gmra.mrb[0].mxu0 %v1161
    %v2201 = vpop.f32.mrb[0].mxu0
    %v2202 = vadd.f32 %v1995, %v2201
    %v2203 = vpop.f32.mrb[0].mxu0
    %v2204 = vpop.f32.mrb[0].mxu0
    %v2205 = vadd.f32 %v1996, %v2204
    %v2206 = vpop.f32.mrb[0].mxu0
    %2207 = vmatprep.mubr.bf16.mxu0 0
    %2208 = vmatmul.mubr.bf16.gmra.mrb[0].mxu0 %v1162
    %v2209 = vpop.f32.mrb[0].mxu0
    %v2210 = vadd.f32 %v1997, %v2209
    %v2211 = vpop.f32.mrb[0].mxu0
    %v2212 = vpop.f32.mrb[0].mxu0
    %v2213 = vadd.f32 %v1998, %v2212
    %v2214 = vpop.f32.mrb[0].mxu0
    %2215 = vmatprep.mubr.bf16.mxu0 0
    %2216 = vmatmul.mubr.bf16.gmra.mrb[0].mxu0 %v1163
    %v2217 = vpop.f32.mrb[0].mxu0
    %v2218 = vadd.f32 %v1999, %v2217
    %v2219 = vpop.f32.mrb[0].mxu0
    %v2220 = vpop.f32.mrb[0].mxu0
    %v2221 = vadd.f32 %v2000, %v2220
    %v2222 = vpop.f32.mrb[0].mxu0
    %2223 = vmatprep.mubr.bf16.mxu0 0
    %2224 = vmatmul.mubr.bf16.gmra.mrb[0].mxu0 %v1164
    %v2225 = vpop.f32.mrb[0].mxu0
    %v2226 = vadd.f32 %v2001, %v2225
    %v2227 = vpop.f32.mrb[0].mxu0
    %v2228 = vpop.f32.mrb[0].mxu0
    %v2229 = vadd.f32 %v2002, %v2228
    %v2230 = vpop.f32.mrb[0].mxu0
    %2231 = vmatprep.mubr.bf16.mxu0 0
    %2232 = vmatmul.mubr.bf16.gmra.mrb[0].mxu0 %v1165
    %v2233 = vpop.f32.mrb[0].mxu0
    %v2234 = vadd.f32 %v2003, %v2233
    %v2235 = vpop.f32.mrb[0].mxu0
    %v2236 = vpop.f32.mrb[0].mxu0
    %v2237 = vadd.f32 %v2004, %v2236
    %v2238 = vpop.f32.mrb[0].mxu0
    %2239 = vmatprep.mubr.bf16.mxu0 0
    %2240 = vmatmul.mubr.bf16.gmra.mrb[0].mxu0 %v1166
    %v2241 = vpop.f32.mrb[0].mxu0
    %v2242 = vadd.f32 %v2005, %v2241
    %v2243 = vpop.f32.mrb[0].mxu0
    %v2244 = vpop.f32.mrb[0].mxu0
    %v2245 = vadd.f32 %v2006, %v2244
    %v2246 = vpop.f32.mrb[0].mxu0
    %2247 = vmatprep.mubr.bf16.mxu0 0
    %2248 = vmatmul.mubr.bf16.gmra.mrb[0].mxu0 %v1167
    %v2249 = vpop.f32.mrb[0].mxu0
    %v2250 = vadd.f32 %v2007, %v2249
    %v2251 = vpop.f32.mrb[0].mxu0
    %v2252 = vpop.f32.mrb[0].mxu0
    %v2253 = vadd.f32 %v2008, %v2252
    %v2254 = vpop.f32.mrb[0].mxu0
    %2255 = vmatprep.mubr.bf16.mxu0 0
    %2256 = vmatmul.mubr.bf16.gmra.mrb[0].mxu0 %v1168
    %v2257 = vpop.f32.mrb[0].mxu0
    %v2258 = vadd.f32 %v2009, %v2257
    %v2259 = vpop.f32.mrb[0].mxu0
    %v2260 = vpop.f32.mrb[0].mxu0
    %v2261 = vadd.f32 %v2010, %v2260
    %v2262 = vpop.f32.mrb[0].mxu0
    %2263 = vmatprep.mubr.bf16.mxu0 0
    %2264 = vmatmul.mubr.bf16.gmra.mrb[0].mxu0 %v1169
    %v2265 = vpop.f32.mrb[0].mxu0
    %v2266 = vadd.f32 %v2011, %v2265
    %v2267 = vpop.f32.mrb[0].mxu0
    %v2268 = vpop.f32.mrb[0].mxu0
    %v2269 = vadd.f32 %v2012, %v2268
    %v2270 = vpop.f32.mrb[0].mxu0
    %2271 = vmatprep.mubr.bf16.mxu0 0
    %2272 = vmatmul.mubr.bf16.gmra.mrb[0].mxu0 %v1170
    %v2273 = vpop.f32.mrb[0].mxu0
    %v2274 = vadd.f32 %v2013, %v2273
    %v2275 = vpop.f32.mrb[0].mxu0
    %v2276 = vpop.f32.mrb[0].mxu0
    %v2277 = vadd.f32 %v2014, %v2276
    %v2278 = vpop.f32.mrb[0].mxu0
    %2279 = vmatprep.mubr.bf16.mxu0 0
    %2280 = vmatmul.mubr.bf16.gmra.mrb[0].mxu0 %v1171
    %v2281 = vpop.f32.mrb[0].mxu0
    %v2282 = vadd.f32 %v2015, %v2281
    %v2283 = vpop.f32.mrb[0].mxu0
    %v2284 = vpop.f32.mrb[0].mxu0
    %v2285 = vadd.f32 %v2016, %v2284
    %v2286 = vpop.f32.mrb[0].mxu0
    %2287 = vmatprep.mubr.bf16.mxu0 0
    %2288 = vmatmul.mubr.bf16.gmra.mrb[0].mxu0 %v1172
    %v2289 = vpop.f32.mrb[0].mxu0
    %v2290 = vadd.f32 %v2017, %v2289
    %v2291 = vpop.f32.mrb[0].mxu0
    %v2292 = vpop.f32.mrb[0].mxu0
    %v2293 = vadd.f32 %v2018, %v2292
    %v2294 = vpop.f32.mrb[0].mxu0
    %2295 = vmatprep.mubr.bf16.mxu0 0
    %2296 = vmatmul.mubr.bf16.gmra.mrb[0].mxu0 %v1173
    %v2297 = vpop.f32.mrb[0].mxu0
    %v2298 = vadd.f32 %v2019, %v2297
    %v2299 = vpop.f32.mrb[0].mxu0
    %v2300 = vpop.f32.mrb[0].mxu0
    %v2301 = vadd.f32 %v2020, %v2300
    %v2302 = vpop.f32.mrb[0].mxu0
    %2303 = vmatprep.mubr.bf16.mxu0 0
    %2304 = vmatmul.mubr.bf16.gmra.mrb[0].mxu0 %v1174
    %v2305 = vpop.f32.mrb[0].mxu0
    %v2306 = vadd.f32 %v2021, %v2305
    %v2307 = vpop.f32.mrb[0].mxu0
    %v2308 = vpop.f32.mrb[0].mxu0
    %v2309 = vadd.f32 %v2022, %v2308
    %v2310 = vpop.f32.mrb[0].mxu0
    %2311 = vmatprep.mubr.bf16.mxu0 0
    %2312 = vmatmul.mubr.bf16.gmra.mrb[0].mxu0 %v1175
    %v2313 = vpop.f32.mrb[0].mxu0
    %v2314 = vadd.f32 %v2023, %v2313
    %v2315 = vpop.f32.mrb[0].mxu0
    %v2316 = vpop.f32.mrb[0].mxu0
    %v2317 = vadd.f32 %v2024, %v2316
    %v2318 = vpop.f32.mrb[0].mxu0
    %2319 = vmatprep.mubr.bf16.mxu0 0
    %2320 = vmatmul.mubr.bf16.gmra.mrb[0].mxu0 %v1176
    %v2321 = vpop.f32.mrb[0].mxu0
    %v2322 = vadd.f32 %v2025, %v2321
    %v2323 = vpop.f32.mrb[0].mxu0
    %v2324 = vpop.f32.mrb[0].mxu0
    %v2325 = vadd.f32 %v2026, %v2324
    %v2326 = vpop.f32.mrb[0].mxu0
    %2327 = vmatprep.mubr.bf16.mxu0 0
    %2328 = vmatmul.mubr.bf16.gmra.mrb[0].mxu0 %v1177
    %v2329 = vpop.f32.mrb[0].mxu0
    %v2330 = vadd.f32 %v2027, %v2329
    %v2331 = vpop.f32.mrb[0].mxu0
    %v2332 = vpop.f32.mrb[0].mxu0
    %v2333 = vadd.f32 %v2028, %v2332
    %v2334 = vpop.f32.mrb[0].mxu0
    %2335 = vmatprep.mubr.bf16.mxu0 0
    %2336 = vmatmul.mubr.bf16.gmra.mrb[0].mxu0 %v1178
    %v2337 = vpop.f32.mrb[0].mxu0
    %v2338 = vadd.f32 %v2029, %v2337
    %v2339 = vpop.f32.mrb[0].mxu0
    %v2340 = vpop.f32.mrb[0].mxu0
    %v2341 = vadd.f32 %v2030, %v2340
    %v2342 = vpop.f32.mrb[0].mxu0
    %2343 = vmatprep.mubr.bf16.mxu0 0
    %2344 = vmatmul.mubr.bf16.gmra.mrb[0].mxu0 %v1179
    %v2345 = vpop.f32.mrb[0].mxu0
    %v2346 = vadd.f32 %v2031, %v2345
    %v2347 = vpop.f32.mrb[0].mxu0
    %v2348 = vpop.f32.mrb[0].mxu0
    %v2349 = vadd.f32 %v2032, %v2348
    %v2350 = vpop.f32.mrb[0].mxu0
    %2351 = vmatprep.mubr.bf16.mxu0 0
    %2352 = vmatmul.mubr.bf16.gmra.mrb[0].mxu0 %v1180
    %v2353 = vpop.f32.mrb[0].mxu0
    %v2354 = vadd.f32 %v2033, %v2353
    %v2355 = vpop.f32.mrb[0].mxu0
    %v2356 = vpop.f32.mrb[0].mxu0
    %v2357 = vadd.f32 %v2034, %v2356
    %v2358 = vpop.f32.mrb[0].mxu0
    %2359 = vmatprep.mubr.bf16.mxu0 0
    %2360 = vmatmul.mubr.bf16.gmra.mrb[0].mxu0 %v1181
    %v2361 = vpop.f32.mrb[0].mxu0
    %v2362 = vadd.f32 %v2035, %v2361
    %v2363 = vpop.f32.mrb[0].mxu0
    %v2364 = vpop.f32.mrb[0].mxu0
    %v2365 = vadd.f32 %v2036, %v2364
    %v2366 = vpop.f32.mrb[0].mxu0
    %2367 = vmatprep.mubr.bf16.mxu0 0
    %2368 = vmatmul.mubr.bf16.gmra.mrb[0].mxu0 %v1182
    %v2369 = vpop.f32.mrb[0].mxu0
    %v2370 = vadd.f32 %v2037, %v2369
    %v2371 = vpop.f32.mrb[0].mxu0
    %v2372 = vpop.f32.mrb[0].mxu0
    %v2373 = vadd.f32 %v2038, %v2372
    %v2374 = vpop.f32.mrb[0].mxu0
    %2375 = vdwg.mxu0
    %v2376 = vmax.f32 %v2122, 0.0
    %v2377 = vmax.f32 %v2125, 0.0
    %v2378 = vmax.f32 %v2130, 0.0
    %v2379 = vmax.f32 %v2133, 0.0
    %v2380 = vmax.f32 %v2138, 0.0
    %v2381 = vmax.f32 %v2141, 0.0
    %v2382 = vmax.f32 %v2146, 0.0
    %v2383 = vmax.f32 %v2149, 0.0
    %v2384 = vmax.f32 %v2154, 0.0
    %v2385 = vmax.f32 %v2157, 0.0
    %v2386 = vmax.f32 %v2162, 0.0
    %v2387 = vmax.f32 %v2165, 0.0
    %v2388 = vmax.f32 %v2170, 0.0
    %v2389 = vmax.f32 %v2173, 0.0
    %v2390 = vmax.f32 %v2178, 0.0
    %v2391 = vmax.f32 %v2181, 0.0
    %v2392 = vmax.f32 %v2186, 0.0
    %v2393 = vmax.f32 %v2189, 0.0
    %v2394 = vmax.f32 %v2194, 0.0
    %v2395 = vmax.f32 %v2197, 0.0
    %v2396 = vmax.f32 %v2202, 0.0
    %v2397 = vmax.f32 %v2205, 0.0
    %v2398 = vmax.f32 %v2210, 0.0
    %v2399 = vmax.f32 %v2213, 0.0
    %v2400 = vmax.f32 %v2218, 0.0
    %v2401 = vmax.f32 %v2221, 0.0
    %v2402 = vmax.f32 %v2226, 0.0
    %v2403 = vmax.f32 %v2229, 0.0
    %v2404 = vmax.f32 %v2234, 0.0
    %v2405 = vmax.f32 %v2237, 0.0
    %v2406 = vmax.f32 %v2242, 0.0
    %v2407 = vmax.f32 %v2245, 0.0
    %v2408 = vmax.f32 %v2250, 0.0
    %v2409 = vmax.f32 %v2253, 0.0
    %v2410 = vmax.f32 %v2258, 0.0
    %v2411 = vmax.f32 %v2261, 0.0
    %v2412 = vmax.f32 %v2266, 0.0
    %v2413 = vmax.f32 %v2269, 0.0
    %v2414 = vmax.f32 %v2274, 0.0
    %v2415 = vmax.f32 %v2277, 0.0
    %v2416 = vmax.f32 %v2282, 0.0
    %v2417 = vmax.f32 %v2285, 0.0
    %v2418 = vmax.f32 %v2290, 0.0
    %v2419 = vmax.f32 %v2293, 0.0
    %v2420 = vmax.f32 %v2298, 0.0
    %v2421 = vmax.f32 %v2301, 0.0
    %v2422 = vmax.f32 %v2306, 0.0
    %v2423 = vmax.f32 %v2309, 0.0
    %v2424 = vmax.f32 %v2314, 0.0
    %v2425 = vmax.f32 %v2317, 0.0
    %v2426 = vmax.f32 %v2322, 0.0
    %v2427 = vmax.f32 %v2325, 0.0
    %v2428 = vmax.f32 %v2330, 0.0
    %v2429 = vmax.f32 %v2333, 0.0
    %v2430 = vmax.f32 %v2338, 0.0
    %v2431 = vmax.f32 %v2341, 0.0
    %v2432 = vmax.f32 %v2346, 0.0
    %v2433 = vmax.f32 %v2349, 0.0
    %v2434 = vmax.f32 %v2354, 0.0
    %v2435 = vmax.f32 %v2357, 0.0
    %v2436 = vmax.f32 %v2362, 0.0
    %v2437 = vmax.f32 %v2365, 0.0
    %v2438 = vmax.f32 %v2370, 0.0
    %v2439 = vmax.f32 %v2373, 0.0
    %v2440 = vpack.c.bf16 %v2377, %v2376
    %v2441 = vpack.c.bf16 %v2379, %v2378
    %v2442 = vpack.c.bf16 %v2381, %v2380
    %v2443 = vpack.c.bf16 %v2383, %v2382
    %v2444 = vpack.c.bf16 %v2385, %v2384
    %v2445 = vpack.c.bf16 %v2387, %v2386
    %v2446 = vpack.c.bf16 %v2389, %v2388
    %v2447 = vpack.c.bf16 %v2391, %v2390
    %v2448 = vpack.c.bf16 %v2393, %v2392
    %v2449 = vpack.c.bf16 %v2395, %v2394
    %v2450 = vpack.c.bf16 %v2397, %v2396
    %v2451 = vpack.c.bf16 %v2399, %v2398
    %v2452 = vpack.c.bf16 %v2401, %v2400
    %v2453 = vpack.c.bf16 %v2403, %v2402
    %v2454 = vpack.c.bf16 %v2405, %v2404
    %v2455 = vpack.c.bf16 %v2407, %v2406
    %v2456 = vpack.c.bf16 %v2409, %v2408
    %v2457 = vpack.c.bf16 %v2411, %v2410
    %v2458 = vpack.c.bf16 %v2413, %v2412
    %v2459 = vpack.c.bf16 %v2415, %v2414
    %v2460 = vpack.c.bf16 %v2417, %v2416
    %v2461 = vpack.c.bf16 %v2419, %v2418
    %v2462 = vpack.c.bf16 %v2421, %v2420
    %v2463 = vpack.c.bf16 %v2423, %v2422
    %v2464 = vpack.c.bf16 %v2425, %v2424
    %v2465 = vpack.c.bf16 %v2427, %v2426
    %v2466 = vpack.c.bf16 %v2429, %v2428
    %v2467 = vpack.c.bf16 %v2431, %v2430
    %v2468 = vpack.c.bf16 %v2433, %v2432
    %v2469 = vpack.c.bf16 %v2435, %v2434
    %v2470 = vpack.c.bf16 %v2437, %v2436
    %v2471 = vpack.c.bf16 %v2439, %v2438
    %v2472 = vld [vmem:[%s2 + $0x88] sm:$0xf]
    %v2473 = vld [vmem:[%s2 + $0x8c] sm:$0xf]
    %v2474 = vld [vmem:[%s2 + $0x90] sm:$0xf]
    %v2475 = vld [vmem:[%s2 + $0x94] sm:$0xf]
    %v2476 = vld [vmem:[%s2 + $0x98] sm:$0xf]
    %v2477 = vld [vmem:[%s2 + $0x9c] sm:$0xf]
    %v2478 = vld [vmem:[%s2 + $0xa0] sm:$0xf]
    %v2479 = vld [vmem:[%s2 + $0xa4] sm:$0xf]
    %v2480 = vld [vmem:[%s2 + $0xa8] sm:$0xf]
    %v2481 = vld [vmem:[%s2 + $0xac] sm:$0xf]
    %v2482 = vld [vmem:[%s2 + $0xb0] sm:$0xf]
    %v2483 = vld [vmem:[%s2 + $0xb4] sm:$0xf]
    %v2484 = vld [vmem:[%s2 + $0xb8] sm:$0xf]
    %v2485 = vld [vmem:[%s2 + $0xbc] sm:$0xf]
    %v2486 = vld [vmem:[%s2 + $0xc0] sm:$0xf]
    %v2487 = vld [vmem:[%s2 + $0xc4] sm:$0xf]
    %v2488 = vlaneseq
    %v2489 = vshrl.u32 %v2488, 7
    %v2490 = vsub.s32 0, %v2489
    %v2491 = vrot.slane %v83, %v2490
    %v2508 = vunpack.c.l.b16 %v2472
    %v2509 = vunpack.c.l.b16 %v2473
    %v2510 = vunpack.c.l.b16 %v2474
    %v2511 = vunpack.c.l.b16 %v2475
    %v2512 = vunpack.c.l.b16 %v2476
    %v2513 = vunpack.c.l.b16 %v2477
    %v2514 = vunpack.c.l.b16 %v2478
    %v2515 = vunpack.c.l.b16 %v2479
    %v2516 = vunpack.c.l.b16 %v2480
    %v2517 = vunpack.c.l.b16 %v2481
    %v2518 = vunpack.c.l.b16 %v2482
    %v2519 = vunpack.c.l.b16 %v2483
    %v2520 = vunpack.c.l.b16 %v2484
    %v2521 = vunpack.c.l.b16 %v2485
    %v2522 = vunpack.c.l.b16 %v2486
    %v2523 = vunpack.c.l.b16 %v2487
    %v2524 = vpack.c.b16 %v2509, %v2508
    %v2525 = vpack.c.b16 %v2511, %v2510
    %v2526 = vpack.c.b16 %v2513, %v2512
    %v2527 = vpack.c.b16 %v2515, %v2514
    %v2528 = vpack.c.b16 %v2517, %v2516
    %v2529 = vpack.c.b16 %v2519, %v2518
    %v2530 = vpack.c.b16 %v2521, %v2520
    %v2531 = vpack.c.b16 %v2523, %v2522
    %2540 = vmatprep.subr.bf16.mxu0 0
    %2541 = vmatpush1.bf16.msra.mxu0 %v2524
    %2542 = vmatprep.subr.bf16.mxu0 0
    %2543 = vmatpush1.bf16.msra.mxu0 %v2525
    %2544 = vmatprep.subr.bf16.mxu0 0
    %2545 = vmatpush1.bf16.msra.mxu0 %v2526
    %2546 = vmatprep.subr.bf16.mxu0 0
    %2547 = vmatpush1.bf16.msra.mxu0 %v2527
    %2548 = vmatprep.subr.bf16.mxu0 0
    %2549 = vmatpush1.bf16.msra.mxu0 %v2528
    %2550 = vmatprep.subr.bf16.mxu0 0
    %2551 = vmatpush1.bf16.msra.mxu0 %v2529
    %2552 = vmatprep.subr.bf16.mxu0 0
    %2553 = vmatpush1.bf16.msra.mxu0 %v2530
    %2554 = vmatprep.subr.bf16.mxu0 0
    %2555 = vmatpush1.bf16.msra.mxu0 %v2531
    %2556 = vmatprep.subr.bf16.mxu0 0
    %2557 = vmatpush1.bf16.msra.mxu0 0
    %2558 = vmatprep.subr.bf16.mxu0 0
    %2559 = vmatpush1.bf16.msra.mxu0 0
    %2560 = vmatprep.subr.bf16.mxu0 0
    %2561 = vmatpush1.bf16.msra.mxu0 0
    %2562 = vmatprep.subr.bf16.mxu0 0
    %2563 = vmatpush1.bf16.msra.mxu0 0
    %2564 = vmatprep.subr.bf16.mxu0 0
    %2565 = vmatpush1.bf16.msra.mxu0 0
    %2566 = vmatprep.subr.bf16.mxu0 0
    %2567 = vmatpush1.bf16.msra.mxu0 0
    %2568 = vmatprep.subr.bf16.mxu0 0
    %2569 = vmatpush1.bf16.msra.mxu0 0
    %2570 = vmatprep.subr.bf16.mxu0 0
    %2571 = vmatpush1.bf16.msra.mxu0 0
    %2572 = vmatprep.mubr.bf16.mxu0 0
    %2573 = vmatmul.mubr.bf16.gmra.mrb[0].mxu0 %v2440
    %v2574 = vpop.f32.mrb[0].mxu0
    %v2575 = vadd.f32 %v2491, %v2574
    %v2576 = vpop.f32.mrb[0].mxu0
    %v2577 = vpop.f32.mrb[0].mxu0
    %v2578 = vadd.f32 %v2491, %v2577
    %v2579 = vpop.f32.mrb[0].mxu0
    %2580 = vmatprep.mubr.bf16.mxu0 0
    %2581 = vmatmul.mubr.bf16.gmra.mrb[0].mxu0 %v2441
    %v2582 = vpop.f32.mrb[0].mxu0
    %v2583 = vadd.f32 %v2491, %v2582
    %v2584 = vpop.f32.mrb[0].mxu0
    %v2585 = vpop.f32.mrb[0].mxu0
    %v2586 = vadd.f32 %v2491, %v2585
    %v2587 = vpop.f32.mrb[0].mxu0
    %2588 = vmatprep.mubr.bf16.mxu0 0
    %2589 = vmatmul.mubr.bf16.gmra.mrb[0].mxu0 %v2442
    %v2590 = vpop.f32.mrb[0].mxu0
    %v2591 = vadd.f32 %v2491, %v2590
    %v2592 = vpop.f32.mrb[0].mxu0
    %v2593 = vpop.f32.mrb[0].mxu0
    %v2594 = vadd.f32 %v2491, %v2593
    %v2595 = vpop.f32.mrb[0].mxu0
    %2596 = vmatprep.mubr.bf16.mxu0 0
    %2597 = vmatmul.mubr.bf16.gmra.mrb[0].mxu0 %v2443
    %v2598 = vpop.f32.mrb[0].mxu0
    %v2599 = vadd.f32 %v2491, %v2598
    %v2600 = vpop.f32.mrb[0].mxu0
    %v2601 = vpop.f32.mrb[0].mxu0
    %v2602 = vadd.f32 %v2491, %v2601
    %v2603 = vpop.f32.mrb[0].mxu0
    %2604 = vmatprep.mubr.bf16.mxu0 0
    %2605 = vmatmul.mubr.bf16.gmra.mrb[0].mxu0 %v2444
    %v2606 = vpop.f32.mrb[0].mxu0
    %v2607 = vadd.f32 %v2491, %v2606
    %v2608 = vpop.f32.mrb[0].mxu0
    %v2609 = vpop.f32.mrb[0].mxu0
    %v2610 = vadd.f32 %v2491, %v2609
    %v2611 = vpop.f32.mrb[0].mxu0
    %2612 = vmatprep.mubr.bf16.mxu0 0
    %2613 = vmatmul.mubr.bf16.gmra.mrb[0].mxu0 %v2445
    %v2614 = vpop.f32.mrb[0].mxu0
    %v2615 = vadd.f32 %v2491, %v2614
    %v2616 = vpop.f32.mrb[0].mxu0
    %v2617 = vpop.f32.mrb[0].mxu0
    %v2618 = vadd.f32 %v2491, %v2617
    %v2619 = vpop.f32.mrb[0].mxu0
    %2620 = vmatprep.mubr.bf16.mxu0 0
    %2621 = vmatmul.mubr.bf16.gmra.mrb[0].mxu0 %v2446
    %v2622 = vpop.f32.mrb[0].mxu0
    %v2623 = vadd.f32 %v2491, %v2622
    %v2624 = vpop.f32.mrb[0].mxu0
    %v2625 = vpop.f32.mrb[0].mxu0
    %v2626 = vadd.f32 %v2491, %v2625
    %v2627 = vpop.f32.mrb[0].mxu0
    %2628 = vmatprep.mubr.bf16.mxu0 0
    %2629 = vmatmul.mubr.bf16.gmra.mrb[0].mxu0 %v2447
    %v2630 = vpop.f32.mrb[0].mxu0
    %v2631 = vadd.f32 %v2491, %v2630
    %v2632 = vpop.f32.mrb[0].mxu0
    %v2633 = vpop.f32.mrb[0].mxu0
    %v2634 = vadd.f32 %v2491, %v2633
    %v2635 = vpop.f32.mrb[0].mxu0
    %2636 = vmatprep.mubr.bf16.mxu0 0
    %2637 = vmatmul.mubr.bf16.gmra.mrb[0].mxu0 %v2448
    %v2638 = vpop.f32.mrb[0].mxu0
    %v2639 = vadd.f32 %v2491, %v2638
    %v2640 = vpop.f32.mrb[0].mxu0
    %v2641 = vpop.f32.mrb[0].mxu0
    %v2642 = vadd.f32 %v2491, %v2641
    %v2643 = vpop.f32.mrb[0].mxu0
    %2644 = vmatprep.mubr.bf16.mxu0 0
    %2645 = vmatmul.mubr.bf16.gmra.mrb[0].mxu0 %v2449
    %v2646 = vpop.f32.mrb[0].mxu0
    %v2647 = vadd.f32 %v2491, %v2646
    %v2648 = vpop.f32.mrb[0].mxu0
    %v2649 = vpop.f32.mrb[0].mxu0
    %v2650 = vadd.f32 %v2491, %v2649
    %v2651 = vpop.f32.mrb[0].mxu0
    %2652 = vmatprep.mubr.bf16.mxu0 0
    %2653 = vmatmul.mubr.bf16.gmra.mrb[0].mxu0 %v2450
    %v2654 = vpop.f32.mrb[0].mxu0
    %v2655 = vadd.f32 %v2491, %v2654
    %v2656 = vpop.f32.mrb[0].mxu0
    %v2657 = vpop.f32.mrb[0].mxu0
    %v2658 = vadd.f32 %v2491, %v2657
    %v2659 = vpop.f32.mrb[0].mxu0
    %2660 = vmatprep.mubr.bf16.mxu0 0
    %2661 = vmatmul.mubr.bf16.gmra.mrb[0].mxu0 %v2451
    %v2662 = vpop.f32.mrb[0].mxu0
    %v2663 = vadd.f32 %v2491, %v2662
    %v2664 = vpop.f32.mrb[0].mxu0
    %v2665 = vpop.f32.mrb[0].mxu0
    %v2666 = vadd.f32 %v2491, %v2665
    %v2667 = vpop.f32.mrb[0].mxu0
    %2668 = vmatprep.mubr.bf16.mxu0 0
    %2669 = vmatmul.mubr.bf16.gmra.mrb[0].mxu0 %v2452
    %v2670 = vpop.f32.mrb[0].mxu0
    %v2671 = vadd.f32 %v2491, %v2670
    %v2672 = vpop.f32.mrb[0].mxu0
    %v2673 = vpop.f32.mrb[0].mxu0
    %v2674 = vadd.f32 %v2491, %v2673
    %v2675 = vpop.f32.mrb[0].mxu0
    %2676 = vmatprep.mubr.bf16.mxu0 0
    %2677 = vmatmul.mubr.bf16.gmra.mrb[0].mxu0 %v2453
    %v2678 = vpop.f32.mrb[0].mxu0
    %v2679 = vadd.f32 %v2491, %v2678
    %v2680 = vpop.f32.mrb[0].mxu0
    %v2681 = vpop.f32.mrb[0].mxu0
    %v2682 = vadd.f32 %v2491, %v2681
    %v2683 = vpop.f32.mrb[0].mxu0
    %2684 = vmatprep.mubr.bf16.mxu0 0
    %2685 = vmatmul.mubr.bf16.gmra.mrb[0].mxu0 %v2454
    %v2686 = vpop.f32.mrb[0].mxu0
    %v2687 = vadd.f32 %v2491, %v2686
    %v2688 = vpop.f32.mrb[0].mxu0
    %v2689 = vpop.f32.mrb[0].mxu0
    %v2690 = vadd.f32 %v2491, %v2689
    %v2691 = vpop.f32.mrb[0].mxu0
    %2692 = vmatprep.mubr.bf16.mxu0 0
    %2693 = vmatmul.mubr.bf16.gmra.mrb[0].mxu0 %v2455
    %v2694 = vpop.f32.mrb[0].mxu0
    %v2695 = vadd.f32 %v2491, %v2694
    %v2696 = vpop.f32.mrb[0].mxu0
    %v2697 = vpop.f32.mrb[0].mxu0
    %v2698 = vadd.f32 %v2491, %v2697
    %v2699 = vpop.f32.mrb[0].mxu0
    %2700 = vmatprep.mubr.bf16.mxu0 0
    %2701 = vmatmul.mubr.bf16.gmra.mrb[0].mxu0 %v2456
    %v2702 = vpop.f32.mrb[0].mxu0
    %v2703 = vadd.f32 %v2491, %v2702
    %v2704 = vpop.f32.mrb[0].mxu0
    %v2705 = vpop.f32.mrb[0].mxu0
    %v2706 = vadd.f32 %v2491, %v2705
    %v2707 = vpop.f32.mrb[0].mxu0
    %2708 = vmatprep.mubr.bf16.mxu0 0
    %2709 = vmatmul.mubr.bf16.gmra.mrb[0].mxu0 %v2457
    %v2710 = vpop.f32.mrb[0].mxu0
    %v2711 = vadd.f32 %v2491, %v2710
    %v2712 = vpop.f32.mrb[0].mxu0
    %v2713 = vpop.f32.mrb[0].mxu0
    %v2714 = vadd.f32 %v2491, %v2713
    %v2715 = vpop.f32.mrb[0].mxu0
    %2716 = vmatprep.mubr.bf16.mxu0 0
    %2717 = vmatmul.mubr.bf16.gmra.mrb[0].mxu0 %v2458
    %v2718 = vpop.f32.mrb[0].mxu0
    %v2719 = vadd.f32 %v2491, %v2718
    %v2720 = vpop.f32.mrb[0].mxu0
    %v2721 = vpop.f32.mrb[0].mxu0
    %v2722 = vadd.f32 %v2491, %v2721
    %v2723 = vpop.f32.mrb[0].mxu0
    %2724 = vmatprep.mubr.bf16.mxu0 0
    %2725 = vmatmul.mubr.bf16.gmra.mrb[0].mxu0 %v2459
    %v2726 = vpop.f32.mrb[0].mxu0
    %v2727 = vadd.f32 %v2491, %v2726
    %v2728 = vpop.f32.mrb[0].mxu0
    %v2729 = vpop.f32.mrb[0].mxu0
    %v2730 = vadd.f32 %v2491, %v2729
    %v2731 = vpop.f32.mrb[0].mxu0
    %2732 = vmatprep.mubr.bf16.mxu0 0
    %2733 = vmatmul.mubr.bf16.gmra.mrb[0].mxu0 %v2460
    %v2734 = vpop.f32.mrb[0].mxu0
    %v2735 = vadd.f32 %v2491, %v2734
    %v2736 = vpop.f32.mrb[0].mxu0
    %v2737 = vpop.f32.mrb[0].mxu0
    %v2738 = vadd.f32 %v2491, %v2737
    %v2739 = vpop.f32.mrb[0].mxu0
    %2740 = vmatprep.mubr.bf16.mxu0 0
    %2741 = vmatmul.mubr.bf16.gmra.mrb[0].mxu0 %v2461
    %v2742 = vpop.f32.mrb[0].mxu0
    %v2743 = vadd.f32 %v2491, %v2742
    %v2744 = vpop.f32.mrb[0].mxu0
    %v2745 = vpop.f32.mrb[0].mxu0
    %v2746 = vadd.f32 %v2491, %v2745
    %v2747 = vpop.f32.mrb[0].mxu0
    %2748 = vmatprep.mubr.bf16.mxu0 0
    %2749 = vmatmul.mubr.bf16.gmra.mrb[0].mxu0 %v2462
    %v2750 = vpop.f32.mrb[0].mxu0
    %v2751 = vadd.f32 %v2491, %v2750
    %v2752 = vpop.f32.mrb[0].mxu0
    %v2753 = vpop.f32.mrb[0].mxu0
    %v2754 = vadd.f32 %v2491, %v2753
    %v2755 = vpop.f32.mrb[0].mxu0
    %2756 = vmatprep.mubr.bf16.mxu0 0
    %2757 = vmatmul.mubr.bf16.gmra.mrb[0].mxu0 %v2463
    %v2758 = vpop.f32.mrb[0].mxu0
    %v2759 = vadd.f32 %v2491, %v2758
    %v2760 = vpop.f32.mrb[0].mxu0
    %v2761 = vpop.f32.mrb[0].mxu0
    %v2762 = vadd.f32 %v2491, %v2761
    %v2763 = vpop.f32.mrb[0].mxu0
    %2764 = vmatprep.mubr.bf16.mxu0 0
    %2765 = vmatmul.mubr.bf16.gmra.mrb[0].mxu0 %v2464
    %v2766 = vpop.f32.mrb[0].mxu0
    %v2767 = vadd.f32 %v2491, %v2766
    %v2768 = vpop.f32.mrb[0].mxu0
    %v2769 = vpop.f32.mrb[0].mxu0
    %v2770 = vadd.f32 %v2491, %v2769
    %v2771 = vpop.f32.mrb[0].mxu0
    %2772 = vmatprep.mubr.bf16.mxu0 0
    %2773 = vmatmul.mubr.bf16.gmra.mrb[0].mxu0 %v2465
    %v2774 = vpop.f32.mrb[0].mxu0
    %v2775 = vadd.f32 %v2491, %v2774
    %v2776 = vpop.f32.mrb[0].mxu0
    %v2777 = vpop.f32.mrb[0].mxu0
    %v2778 = vadd.f32 %v2491, %v2777
    %v2779 = vpop.f32.mrb[0].mxu0
    %2780 = vmatprep.mubr.bf16.mxu0 0
    %2781 = vmatmul.mubr.bf16.gmra.mrb[0].mxu0 %v2466
    %v2782 = vpop.f32.mrb[0].mxu0
    %v2783 = vadd.f32 %v2491, %v2782
    %v2784 = vpop.f32.mrb[0].mxu0
    %v2785 = vpop.f32.mrb[0].mxu0
    %v2786 = vadd.f32 %v2491, %v2785
    %v2787 = vpop.f32.mrb[0].mxu0
    %2788 = vmatprep.mubr.bf16.mxu0 0
    %2789 = vmatmul.mubr.bf16.gmra.mrb[0].mxu0 %v2467
    %v2790 = vpop.f32.mrb[0].mxu0
    %v2791 = vadd.f32 %v2491, %v2790
    %v2792 = vpop.f32.mrb[0].mxu0
    %v2793 = vpop.f32.mrb[0].mxu0
    %v2794 = vadd.f32 %v2491, %v2793
    %v2795 = vpop.f32.mrb[0].mxu0
    %2796 = vmatprep.mubr.bf16.mxu0 0
    %2797 = vmatmul.mubr.bf16.gmra.mrb[0].mxu0 %v2468
    %v2798 = vpop.f32.mrb[0].mxu0
    %v2799 = vadd.f32 %v2491, %v2798
    %v2800 = vpop.f32.mrb[0].mxu0
    %v2801 = vpop.f32.mrb[0].mxu0
    %v2802 = vadd.f32 %v2491, %v2801
    %v2803 = vpop.f32.mrb[0].mxu0
    %2804 = vmatprep.mubr.bf16.mxu0 0
    %2805 = vmatmul.mubr.bf16.gmra.mrb[0].mxu0 %v2469
    %v2806 = vpop.f32.mrb[0].mxu0
    %v2807 = vadd.f32 %v2491, %v2806
    %v2808 = vpop.f32.mrb[0].mxu0
    %v2809 = vpop.f32.mrb[0].mxu0
    %v2810 = vadd.f32 %v2491, %v2809
    %v2811 = vpop.f32.mrb[0].mxu0
    %2812 = vmatprep.mubr.bf16.mxu0 0
    %2813 = vmatmul.mubr.bf16.gmra.mrb[0].mxu0 %v2470
    %v2814 = vpop.f32.mrb[0].mxu0
    %v2815 = vadd.f32 %v2491, %v2814
    %v2816 = vpop.f32.mrb[0].mxu0
    %v2817 = vpop.f32.mrb[0].mxu0
    %v2818 = vadd.f32 %v2491, %v2817
    %v2819 = vpop.f32.mrb[0].mxu0
    %2820 = vmatprep.mubr.bf16.mxu0 0
    %2821 = vmatmul.mubr.bf16.gmra.mrb[0].mxu0 %v2471
    %v2822 = vpop.f32.mrb[0].mxu0
    %v2823 = vadd.f32 %v2491, %v2822
    %v2824 = vpop.f32.mrb[0].mxu0
    %v2825 = vpop.f32.mrb[0].mxu0
    %v2826 = vadd.f32 %v2491, %v2825
    %v2827 = vpop.f32.mrb[0].mxu0
    %2828 = vdwg.mxu0
    %v2829 = vpack.c.bf16 %v2578, %v2575
    %v2830 = vpack.c.bf16 %v2586, %v2583
    %v2831 = vpack.c.bf16 %v2594, %v2591
    %v2832 = vpack.c.bf16 %v2602, %v2599
    %v2833 = vpack.c.bf16 %v2610, %v2607
    %v2834 = vpack.c.bf16 %v2618, %v2615
    %v2835 = vpack.c.bf16 %v2626, %v2623
    %v2836 = vpack.c.bf16 %v2634, %v2631
    %v2837 = vpack.c.bf16 %v2642, %v2639
    %v2838 = vpack.c.bf16 %v2650, %v2647
    %v2839 = vpack.c.bf16 %v2658, %v2655
    %v2840 = vpack.c.bf16 %v2666, %v2663
    %v2841 = vpack.c.bf16 %v2674, %v2671
    %v2842 = vpack.c.bf16 %v2682, %v2679
    %v2843 = vpack.c.bf16 %v2690, %v2687
    %v2844 = vpack.c.bf16 %v2698, %v2695
    %v2845 = vpack.c.bf16 %v2706, %v2703
    %v2846 = vpack.c.bf16 %v2714, %v2711
    %v2847 = vpack.c.bf16 %v2722, %v2719
    %v2848 = vpack.c.bf16 %v2730, %v2727
    %v2849 = vpack.c.bf16 %v2738, %v2735
    %v2850 = vpack.c.bf16 %v2746, %v2743
    %v2851 = vpack.c.bf16 %v2754, %v2751
    %v2852 = vpack.c.bf16 %v2762, %v2759
    %v2853 = vpack.c.bf16 %v2770, %v2767
    %v2854 = vpack.c.bf16 %v2778, %v2775
    %v2855 = vpack.c.bf16 %v2786, %v2783
    %v2856 = vpack.c.bf16 %v2794, %v2791
    %v2857 = vpack.c.bf16 %v2802, %v2799
    %v2858 = vpack.c.bf16 %v2810, %v2807
    %v2859 = vpack.c.bf16 %v2818, %v2815
    %v2860 = vpack.c.bf16 %v2826, %v2823
    %v2893 = vunpack.c.l.b16 %v2829
    %v2894 = vunpack.c.h.b16 %v2829
    %v2895 = vunpack.c.l.b16 %v2830
    %v2896 = vunpack.c.h.b16 %v2830
    %v2897 = vunpack.c.l.b16 %v2831
    %v2898 = vunpack.c.h.b16 %v2831
    %v2899 = vunpack.c.l.b16 %v2832
    %v2900 = vunpack.c.h.b16 %v2832
    %v2901 = vunpack.c.l.b16 %v2833
    %v2902 = vunpack.c.h.b16 %v2833
    %v2903 = vunpack.c.l.b16 %v2834
    %v2904 = vunpack.c.h.b16 %v2834
    %v2905 = vunpack.c.l.b16 %v2835
    %v2906 = vunpack.c.h.b16 %v2835
    %v2907 = vunpack.c.l.b16 %v2836
    %v2908 = vunpack.c.h.b16 %v2836
    %v2909 = vunpack.c.l.b16 %v2837
    %v2910 = vunpack.c.h.b16 %v2837
    %v2911 = vunpack.c.l.b16 %v2838
    %v2912 = vunpack.c.h.b16 %v2838
    %v2913 = vunpack.c.l.b16 %v2839
    %v2914 = vunpack.c.h.b16 %v2839
    %v2915 = vunpack.c.l.b16 %v2840
    %v2916 = vunpack.c.h.b16 %v2840
    %v2917 = vunpack.c.l.b16 %v2841
    %v2918 = vunpack.c.h.b16 %v2841
    %v2919 = vunpack.c.l.b16 %v2842
    %v2920 = vunpack.c.h.b16 %v2842
    %v2921 = vunpack.c.l.b16 %v2843
    %v2922 = vunpack.c.h.b16 %v2843
    %v2923 = vunpack.c.l.b16 %v2844
    %v2924 = vunpack.c.h.b16 %v2844
    %v2925 = vunpack.c.l.b16 %v2845
    %v2926 = vunpack.c.h.b16 %v2845
    %v2927 = vunpack.c.l.b16 %v2846
    %v2928 = vunpack.c.h.b16 %v2846
    %v2929 = vunpack.c.l.b16 %v2847
    %v2930 = vunpack.c.h.b16 %v2847
    %v2931 = vunpack.c.l.b16 %v2848
    %v2932 = vunpack.c.h.b16 %v2848
    %v2933 = vunpack.c.l.b16 %v2849
    %v2934 = vunpack.c.h.b16 %v2849
    %v2935 = vunpack.c.l.b16 %v2850
    %v2936 = vunpack.c.h.b16 %v2850
    %v2937 = vunpack.c.l.b16 %v2851
    %v2938 = vunpack.c.h.b16 %v2851
    %v2939 = vunpack.c.l.b16 %v2852
    %v2940 = vunpack.c.h.b16 %v2852
    %v2941 = vunpack.c.l.b16 %v2853
    %v2942 = vunpack.c.h.b16 %v2853
    %v2943 = vunpack.c.l.b16 %v2854
    %v2944 = vunpack.c.h.b16 %v2854
    %v2945 = vunpack.c.l.b16 %v2855
    %v2946 = vunpack.c.h.b16 %v2855
    %v2947 = vunpack.c.l.b16 %v2856
    %v2948 = vunpack.c.h.b16 %v2856
    %v2949 = vunpack.c.l.b16 %v2857
    %v2950 = vunpack.c.h.b16 %v2857
    %v2951 = vunpack.c.l.b16 %v2858
    %v2952 = vunpack.c.h.b16 %v2858
    %v2953 = vunpack.c.l.b16 %v2859
    %v2954 = vunpack.c.h.b16 %v2859
    %v2955 = vunpack.c.l.b16 %v2860
    %v2956 = vunpack.c.h.b16 %v2860
    %v2957 = vpack.c.b16 %v2893, %v2893
    %v2958 = vpack.c.b16 %v2894, %v2894
    %v2959 = vpack.c.b16 %v2895, %v2895
    %v2960 = vpack.c.b16 %v2896, %v2896
    %v2961 = vpack.c.b16 %v2897, %v2897
    %v2962 = vpack.c.b16 %v2898, %v2898
    %v2963 = vpack.c.b16 %v2899, %v2899
    %v2964 = vpack.c.b16 %v2900, %v2900
    %v2965 = vpack.c.b16 %v2901, %v2901
    %v2966 = vpack.c.b16 %v2902, %v2902
    %v2967 = vpack.c.b16 %v2903, %v2903
    %v2968 = vpack.c.b16 %v2904, %v2904
    %v2969 = vpack.c.b16 %v2905, %v2905
    %v2970 = vpack.c.b16 %v2906, %v2906
    %v2971 = vpack.c.b16 %v2907, %v2907
    %v2972 = vpack.c.b16 %v2908, %v2908
    %v2973 = vpack.c.b16 %v2909, %v2909
    %v2974 = vpack.c.b16 %v2910, %v2910
    %v2975 = vpack.c.b16 %v2911, %v2911
    %v2976 = vpack.c.b16 %v2912, %v2912
    %v2977 = vpack.c.b16 %v2913, %v2913
    %v2978 = vpack.c.b16 %v2914, %v2914
    %v2979 = vpack.c.b16 %v2915, %v2915
    %v2980 = vpack.c.b16 %v2916, %v2916
    %v2981 = vpack.c.b16 %v2917, %v2917
    %v2982 = vpack.c.b16 %v2918, %v2918
    %v2983 = vpack.c.b16 %v2919, %v2919
    %v2984 = vpack.c.b16 %v2920, %v2920
    %v2985 = vpack.c.b16 %v2921, %v2921
    %v2986 = vpack.c.b16 %v2922, %v2922
    %v2987 = vpack.c.b16 %v2923, %v2923
    %v2988 = vpack.c.b16 %v2924, %v2924
    %v2989 = vpack.c.b16 %v2925, %v2925
    %v2990 = vpack.c.b16 %v2926, %v2926
    %v2991 = vpack.c.b16 %v2927, %v2927
    %v2992 = vpack.c.b16 %v2928, %v2928
    %v2993 = vpack.c.b16 %v2929, %v2929
    %v2994 = vpack.c.b16 %v2930, %v2930
    %v2995 = vpack.c.b16 %v2931, %v2931
    %v2996 = vpack.c.b16 %v2932, %v2932
    %v2997 = vpack.c.b16 %v2933, %v2933
    %v2998 = vpack.c.b16 %v2934, %v2934
    %v2999 = vpack.c.b16 %v2935, %v2935
    %v3000 = vpack.c.b16 %v2936, %v2936
    %v3001 = vpack.c.b16 %v2937, %v2937
    %v3002 = vpack.c.b16 %v2938, %v2938
    %v3003 = vpack.c.b16 %v2939, %v2939
    %v3004 = vpack.c.b16 %v2940, %v2940
    %v3005 = vpack.c.b16 %v2941, %v2941
    %v3006 = vpack.c.b16 %v2942, %v2942
    %v3007 = vpack.c.b16 %v2943, %v2943
    %v3008 = vpack.c.b16 %v2944, %v2944
    %v3009 = vpack.c.b16 %v2945, %v2945
    %v3010 = vpack.c.b16 %v2946, %v2946
    %v3011 = vpack.c.b16 %v2947, %v2947
    %v3012 = vpack.c.b16 %v2948, %v2948
    %v3013 = vpack.c.b16 %v2949, %v2949
    %v3014 = vpack.c.b16 %v2950, %v2950
    %v3015 = vpack.c.b16 %v2951, %v2951
    %v3016 = vpack.c.b16 %v2952, %v2952
    %v3017 = vpack.c.b16 %v2953, %v2953
    %v3018 = vpack.c.b16 %v2954, %v2954
    %v3019 = vpack.c.b16 %v2955, %v2955
    %v3020 = vpack.c.b16 %v2956, %v2956
    %3085 = vst [vmem:[#allocation2] sm:$0xf] %v2957
    %3086 = vst [vmem:[#allocation2 + $0x4] sm:$0xf] %v2958
    %3087 = vst [vmem:[#allocation2 + $0x8] sm:$0xf] %v2959
    %3088 = vst [vmem:[#allocation2 + $0xc] sm:$0xf] %v2960
    %3089 = vst [vmem:[#allocation2 + $0x10] sm:$0xf] %v2961
    %3090 = vst [vmem:[#allocation2 + $0x14] sm:$0xf] %v2962
    %3091 = vst [vmem:[#allocation2 + $0x18] sm:$0xf] %v2963
    %3092 = vst [vmem:[#allocation2 + $0x1c] sm:$0xf] %v2964
    %3093 = vst [vmem:[#allocation2 + $0x20] sm:$0xf] %v2965
    %3094 = vst [vmem:[#allocation2 + $0x24] sm:$0xf] %v2966
    %3095 = vst [vmem:[#allocation2 + $0x28] sm:$0xf] %v2967
    %3096 = vst [vmem:[#allocation2 + $0x2c] sm:$0xf] %v2968
    %3097 = vst [vmem:[#allocation2 + $0x30] sm:$0xf] %v2969
    %3098 = vst [vmem:[#allocation2 + $0x34] sm:$0xf] %v2970
    %3099 = vst [vmem:[#allocation2 + $0x38] sm:$0xf] %v2971
    %3100 = vst [vmem:[#allocation2 + $0x3c] sm:$0xf] %v2972
    %3101 = vst [vmem:[#allocation2 + $0x40] sm:$0xf] %v2973
    %3102 = vst [vmem:[#allocation2 + $0x44] sm:$0xf] %v2974
    %3103 = vst [vmem:[#allocation2 + $0x48] sm:$0xf] %v2975
    %3104 = vst [vmem:[#allocation2 + $0x4c] sm:$0xf] %v2976
    %3105 = vst [vmem:[#allocation2 + $0x50] sm:$0xf] %v2977
    %3106 = vst [vmem:[#allocation2 + $0x54] sm:$0xf] %v2978
    %3107 = vst [vmem:[#allocation2 + $0x58] sm:$0xf] %v2979
    %3108 = vst [vmem:[#allocation2 + $0x5c] sm:$0xf] %v2980
    %3109 = vst [vmem:[#allocation2 + $0x60] sm:$0xf] %v2981
    %3110 = vst [vmem:[#allocation2 + $0x64] sm:$0xf] %v2982
    %3111 = vst [vmem:[#allocation2 + $0x68] sm:$0xf] %v2983
    %3112 = vst [vmem:[#allocation2 + $0x6c] sm:$0xf] %v2984
    %3113 = vst [vmem:[#allocation2 + $0x70] sm:$0xf] %v2985
    %3114 = vst [vmem:[#allocation2 + $0x74] sm:$0xf] %v2986
    %3115 = vst [vmem:[#allocation2 + $0x78] sm:$0xf] %v2987
    %3116 = vst [vmem:[#allocation2 + $0x7c] sm:$0xf] %v2988
    %3117 = vst [vmem:[#allocation2 + $0x80] sm:$0xf] %v2989
    %3118 = vst [vmem:[#allocation2 + $0x84] sm:$0xf] %v2990
    %3119 = vst [vmem:[#allocation2 + $0x88] sm:$0xf] %v2991
    %3120 = vst [vmem:[#allocation2 + $0x8c] sm:$0xf] %v2992
    %3121 = vst [vmem:[#allocation2 + $0x90] sm:$0xf] %v2993
    %3122 = vst [vmem:[#allocation2 + $0x94] sm:$0xf] %v2994
    %3123 = vst [vmem:[#allocation2 + $0x98] sm:$0xf] %v2995
    %3124 = vst [vmem:[#allocation2 + $0x9c] sm:$0xf] %v2996
    %3125 = vst [vmem:[#allocation2 + $0xa0] sm:$0xf] %v2997
    %3126 = vst [vmem:[#allocation2 + $0xa4] sm:$0xf] %v2998
    %3127 = vst [vmem:[#allocation2 + $0xa8] sm:$0xf] %v2999
    %3128 = vst [vmem:[#allocation2 + $0xac] sm:$0xf] %v3000
    %3129 = vst [vmem:[#allocation2 + $0xb0] sm:$0xf] %v3001
    %3130 = vst [vmem:[#allocation2 + $0xb4] sm:$0xf] %v3002
    %3131 = vst [vmem:[#allocation2 + $0xb8] sm:$0xf] %v3003
    %3132 = vst [vmem:[#allocation2 + $0xbc] sm:$0xf] %v3004
    %3133 = vst [vmem:[#allocation2 + $0xc0] sm:$0xf] %v3005
    %3134 = vst [vmem:[#allocation2 + $0xc4] sm:$0xf] %v3006
    %3135 = vst [vmem:[#allocation2 + $0xc8] sm:$0xf] %v3007
    %3136 = vst [vmem:[#allocation2 + $0xcc] sm:$0xf] %v3008
    %3137 = vst [vmem:[#allocation2 + $0xd0] sm:$0xf] %v3009
    %3138 = vst [vmem:[#allocation2 + $0xd4] sm:$0xf] %v3010
    %3139 = vst [vmem:[#allocation2 + $0xd8] sm:$0xf] %v3011
    %3140 = vst [vmem:[#allocation2 + $0xdc] sm:$0xf] %v3012
    %3141 = vst [vmem:[#allocation2 + $0xe0] sm:$0xf] %v3013
    %3142 = vst [vmem:[#allocation2 + $0xe4] sm:$0xf] %v3014
    %3143 = vst [vmem:[#allocation2 + $0xe8] sm:$0xf] %v3015
    %3144 = vst [vmem:[#allocation2 + $0xec] sm:$0xf] %v3016
    %3145 = vst [vmem:[#allocation2 + $0xf0] sm:$0xf] %v3017
    %3146 = vst [vmem:[#allocation2 + $0xf4] sm:$0xf] %v3018
    %3147 = vst [vmem:[#allocation2 + $0xf8] sm:$0xf] %v3019
    %3148 = vst [vmem:[#allocation2 + $0xfc] sm:$0xf] %v3020
    // Predicated region
    $region18: #{tpu_custom_call.1} parent=1 // pred_check
      _
    $region19: #{tpu_custom_call.1} parent=1 // pred_check_branch
      %3150 = sbr.rel (0) target = $region21
    $region20: #{tpu_custom_call.1} parent=1 // pred_region
      %s3152 = ssub.s32 4096, 4096
      %3153 = vsyncadd [#allocation3], %s3152
      %s3154 = sshll.u32 [#allocation2], 4
      %s3155 = int_to_ptr.vmem [resolvable:$true] %s3154
      %3160 = dma.vmem_to_hbm [thread:$0]  %s3155, 4096, %s4, [#allocation3], 64, 64, 4
    $region21: #{tpu_custom_call.1} parent=1 // pred_fallthru
      _
    // Predicated region
    $region22: #{tpu_custom_call.1} parent=1 // pred_check
      _
    $region23: #{tpu_custom_call.1} parent=1 // pred_check_branch
      %3162 = sbr.rel (0) target = $region25
    $region24: #{tpu_custom_call.1} parent=1 // pred_region
      %3163 = dma.done [#allocation3], 4096
    $region25: #{tpu_custom_call.1} parent=1 // pred_fallthru
      _
    %3164 = vsyncpa [#allocation3], 1

</llo_original>
